<compile_context>
chip_gen: v7x
topology: tpu7x:2x2x1
jax: 0.10.0
libtpu: 0.0.40
codegen_flags: <defaults>
</compile_context>

<pallas_src>
import functools
import math

import jax
import jax.numpy as jnp
import numpy as np
from jax import lax
from jax.experimental import pallas as pl
from jax.experimental.pallas import tpu as pltpu


# ----------------------------------------------------------------------------
# Chip / tiling helpers.
# ----------------------------------------------------------------------------
def _round_up(x, m):
    return ((x + m - 1) // m) * m


def _tpu_chip_info():
    """Return (tensorcores_per_chip, physical_vmem_bytes), conservative defaults."""
    num_tc, vmem = 1, 64 * 1024 * 1024        # safe default (fits every gen)
    try:
        kind = (jax.devices()[0].device_kind or "").lower()
    except Exception:
        kind = ""
    if ("v7" in kind) or ("7x" in kind):
        num_tc, vmem = 2, 64 * 1024 * 1024    # v7x: 2 TCs, 64 MiB VMEM per TC
    elif ("v6" in kind) or ("v5" in kind) or ("v4" in kind):
        num_tc, vmem = 1, 128 * 1024 * 1024   # v5e/v6e: 1 TC, 128 MiB VMEM
    return num_tc, vmem


def _vmem_estimate(BB, TT, Hp):
    bf2, f4 = 2, 4
    return (2 * BB * TT * 3 * Hp * bf2        # gi blocks (bf16, double-buffered)
            + 2 * BB * TT * Hp * f4           # y blocks (f32, double-buffered)
            + 2 * BB * Hp * f4                # h0
            + 2 * Hp * 3 * Hp * bf2           # W_hh^T (resident, budgeted x2)
            + 2 * Hp * f4                     # b_hn
            + BB * Hp * f4)                   # carried-hidden scratch


def _pick_batch_block(B, Hp, num_tc):
    BB = B
    # Split only on 2-TensorCore chips (v7x); on v5e/v6e nb>1 is a serial loop
    # that just shrinks the matmul M dim.
    if num_tc >= 2 and B % 16 == 0:
        BB = B // 2
    # Cap vreg pressure of the unrolled time loop (~6-7 live (BB,Hp) f32 temps).
    while BB % 16 == 0 and BB * Hp * 4 > 64 * 1024:
        BB //= 2
    return BB


def _pick_time_block(T, BB, Hp, vmem_cap):
    cands = [tt for tt in (64, 32, 16, 8) if T % tt == 0]
    for tt in cands:
        if _vmem_estimate(BB, tt, Hp) <= 0.6 * vmem_cap:
            return tt
    return min(cands) if cands else T


def _pad_gate_cols(w, H, Hp):
    """(rows, 3H) -> (rows, 3Hp): place gate g's H columns at [g*Hp, g*Hp+H)."""
    if Hp == H:
        return w
    rows = w.shape[0]
    out = jnp.zeros((rows, 3 * Hp), w.dtype)
    for g in range(3):
        out = out.at[:, g * Hp:g * Hp + H].set(w[:, g * H:(g + 1) * H])
    return out


# ----------------------------------------------------------------------------
# Pallas kernel: serial GRU recurrence over a block of TT timesteps.
# ----------------------------------------------------------------------------
def _gru_recurrence_kernel(gi_ref, h0_ref, whh_ref, bhn_ref, y_ref, h_scratch,
                           *, block_t, hp):
    """One grid step == `block_t` GRU timesteps for one batch block.

    gi_ref   : (BB, TT, 3Hp) bf16  input-gate pre-activations, biases folded
                                   (b_hn excluded from the n gate).
    h0_ref   : (BB, Hp)      f32   initial hidden state for this batch block.
    whh_ref  : (Hp, 3Hp)     bf16  fused recurrent weight (transposed), resident.
    bhn_ref  : (1, Hp)       f32   hidden bias of n (stays inside r*(...)).
    y_ref    : (BB, TT, Hp)  f32   outputs for this time block.
    h_scratch: (BB, Hp)      f32   hidden state carried across grid steps.

    NOTE: the scratch carry is only valid because the time axis is the
    innermost grid axis and executes serially ("arbitrary").  Do not reorder
    the grid or mark the time axis parallel/core_parallel.
    """
    t_blk = pl.program_id(1)

    @pl.when(t_blk == 0)
    def _():
        h_scratch[...] = h0_ref[...]

    h = h_scratch[...]                                    # (BB, Hp) f32
    whh = whh_ref[...]                                    # (Hp, 3Hp) bf16
    # Hoist the (1,Hp)->(BB,Hp) broadcast out of the unrolled loop (no CSE).
    bhn = jnp.broadcast_to(bhn_ref[...], h.shape)         # (BB, Hp) f32

    # Statically unrolled inner time loop (block_t is a Python int).
    for i in range(block_t):
        gi = gi_ref[:, i, :].astype(jnp.float32)          # (BB, 3Hp)
        # One fused MXU pass (bf16 operands, f32 accumulation) per timestep.
        gh = jnp.dot(h.astype(jnp.bfloat16), whh,
                     preferred_element_type=jnp.float32)  # (BB, 3Hp)
        r = jax.nn.sigmoid(gi[:, 0:hp] + gh[:, 0:hp])
        z = jax.nn.sigmoid(gi[:, hp:2 * hp] + gh[:, hp:2 * hp])
        n = jnp.tanh(gi[:, 2 * hp:] + r * (gh[:, 2 * hp:] + bhn))
        h = n + z * (h - n)                               # == (1-z)*n + z*h
        y_ref[:, i, :] = h.astype(y_ref.dtype)

    h_scratch[...] = h


# ----------------------------------------------------------------------------
# One GRU layer over time (batch_first layout).
# ----------------------------------------------------------------------------
def gru_layer_pallas(x_bth, h0_bh, params, chip):
    """x_bth: (B, T, H) f32; h0_bh: (B, H) f32 -> (y (B,T,H), h_final (B,H))."""
    B, T, H = x_bth.shape
    Hp = params["hp"]
    num_tc, vmem_phys = chip

    # ---- Phase 1: batched input projection (bf16 MXU) + fused biases. -------
    gi = jnp.einsum("bth,hg->btg", x_bth.astype(jnp.bfloat16), params["wih_t"],
                    preferred_element_type=jnp.float32)        # (B, T, 3Hp) f32
    gi = (gi + params["b_i"]).astype(jnp.bfloat16)             # carried as bf16

    h0 = h0_bh.astype(jnp.float32)
    if Hp != H:
        h0 = jnp.pad(h0, ((0, 0), (0, Hp - H)))                # padded lanes = 0

    # ---- Tiling (generation-aware). ------------------------------------------
    BB = _pick_batch_block(B, Hp, num_tc)
    vmem_cap = int(0.75 * vmem_phys)                           # headroom for spills
    TT = _pick_time_block(T, BB, Hp, vmem_cap)
    nb, nt = B // BB, T // TT

    est = _vmem_estimate(BB, TT, Hp)
    vmem_limit = int(min(max(int(1.5 * est), 32 * 1024 * 1024), vmem_cap))

    if num_tc >= 2 and nb > 1:
        # Only core_parallel actually shards across the two v7x TensorCores.
        dims = (pltpu.CORE_PARALLEL, pltpu.ARBITRARY)
    else:
        dims = ("arbitrary", "arbitrary")

    kernel = functools.partial(_gru_recurrence_kernel, block_t=TT, hp=Hp)

    # ---- Phase 2: serial recurrence in Pallas. --------------------------------
    y = pl.pallas_call(
        kernel,
        out_shape=jax.ShapeDtypeStruct((B, T, Hp), jnp.float32),
        grid_spec=pltpu.PrefetchScalarGridSpec(
            num_scalar_prefetch=0,
            grid=(nb, nt),
            in_specs=[
                pl.BlockSpec((BB, TT, 3 * Hp), lambda b, t: (b, t, 0)),  # gi (bf16)
                pl.BlockSpec((BB, Hp), lambda b, t: (b, 0)),             # h0
                pl.BlockSpec((Hp, 3 * Hp), lambda b, t: (0, 0)),         # W_hh^T (resident)
                pl.BlockSpec((1, Hp), lambda b, t: (0, 0)),              # b_hn (resident)
            ],
            out_specs=pl.BlockSpec((BB, TT, Hp), lambda b, t: (b, t, 0)),
            scratch_shapes=[pltpu.VMEM((BB, Hp), jnp.float32)],          # carried hidden
        ),
        compiler_params=pltpu.CompilerParams(
            dimension_semantics=dims,      # (batch blocks, serial time blocks)
            vmem_limit_bytes=vmem_limit,
        ),
    )(gi, h0, params["whh_t"], params["b_hn"])

    y_out = y[:, :, :H] if Hp != H else y
    h_final = y_out[:, T - 1, :]            # output at each step == hidden state
    return y_out, h_final


# ----------------------------------------------------------------------------
# Module wrapper matching the PyTorch EncoderRNN (encoder_type='gru').
# ----------------------------------------------------------------------------
class EncoderRNNPallas:
    """JAX/Pallas equivalent of the PyTorch EncoderRNN (GRU, batch_first=True).

    Like the PyTorch module, num_layers > 1 re-applies the SAME GRU cell,
    feeding the previous iteration's output/hidden back in.
    """

    def __init__(self, input_size, hidden_size, num_layers=1, key=None):
        # NB: like the PyTorch module, the GRU uses hidden_size for both input
        # and hidden dims (the `input_size` arg is ignored for the rnn itself).
        self.num_layers = num_layers
        self.hidden_size = hidden_size
        if key is None:
            key = jax.random.PRNGKey(0)
        H = hidden_size
        k = 1.0 / math.sqrt(H)
        ks = jax.random.split(key, 4)
        # PyTorch nn.GRU parameter shapes / init: U(-1/sqrt(H), 1/sqrt(H)).
        self.w_ih = jax.random.uniform(ks[0], (3 * H, H), jnp.float32, -k, k)
        self.w_hh = jax.random.uniform(ks[1], (3 * H, H), jnp.float32, -k, k)
        self.b_ih = jax.random.uniform(ks[2], (3 * H,), jnp.float32, -k, k)
        self.b_hh = jax.random.uniform(ks[3], (3 * H,), jnp.float32, -k, k)

        self._chip = _tpu_chip_info()

        # ---- Precompute kernel-layout parameters ONCE. ------------------------
        Hp = _round_up(H, 128)               # lane-aligned gate slicing / stores
        wih_t = jnp.transpose(self.w_ih)                         # (H, 3H)
        whh_t = jnp.transpose(self.w_hh)                         # (H, 3H)
        wih_tp = _pad_gate_cols(wih_t, H, Hp)                    # (H, 3Hp)
        whh_tp = _pad_gate_cols(
            jnp.pad(whh_t, ((0, Hp - H), (0, 0))), H, Hp)        # (Hp, 3Hp)

        b_r = self.b_ih[0:H] + self.b_hh[0:H]        # fold into input projection
        b_z = self.b_ih[H:2 * H] + self.b_hh[H:2 * H]
        b_n = self.b_ih[2 * H:3 * H]
        b_i = _pad_gate_cols(jnp.concatenate([b_r, b_z, b_n])[None, :], H, Hp)
        # b_hn must stay separate: it sits inside r * (h W_hn^T + b_hn)
        b_hn = jnp.zeros((1, Hp), jnp.float32).at[:, :H].set(self.b_hh[2 * H:3 * H])

        self._params = {
            "hp": Hp,
            # bf16 operands for single-pass MXU matmuls (f32 accumulation in-kernel)
            "wih_t": wih_tp.astype(jnp.bfloat16),                # (H, 3Hp)
            "whh_t": whh_tp.astype(jnp.bfloat16),                # (Hp, 3Hp)
            "b_i": b_i.reshape(1, 1, 3 * Hp).astype(jnp.float32),
            "b_hn": b_hn.astype(jnp.float32),
        }

    def __call__(self, x, hidden):
        """x: (B, T, H) batch_first; hidden: (1, B, H). Returns same shapes."""
        h = hidden[0]                                            # (B, H)
        for _ in range(self.num_layers):
            x, h = gru_layer_pallas(x, h, self._params, self._chip)
        return x, h[None, :, :]


# ----------------------------------------------------------------------------
# Pure-JAX f32 reference (for correctness check).
# ----------------------------------------------------------------------------
def _gru_reference(x_bth, h0_1bh, w_ih, w_hh, b_ih, b_hh, num_layers):
    H = h0_1bh.shape[-1]

    def cell(h, x_t):
        gi = x_t @ w_ih.T + b_ih
        gh = h @ w_hh.T + b_hh
        i_r, i_z, i_n = gi[:, :H], gi[:, H:2 * H], gi[:, 2 * H:]
        h_r, h_z, h_n = gh[:, :H], gh[:, H:2 * H], gh[:, 2 * H:]
        r = jax.nn.sigmoid(i_r + h_r)
        z = jax.nn.sigmoid(i_z + h_z)
        n = jnp.tanh(i_n + r * h_n)
        h_new = (1.0 - z) * n + z * h
        return h_new, h_new

    x, hidden = x_bth, h0_1bh
    for _ in range(num_layers):
        x_tbh = jnp.transpose(x, (1, 0, 2))
        h_last, ys = lax.scan(cell, hidden[0], x_tbh)
        x = jnp.transpose(ys, (1, 0, 2))
        hidden = h_last[None]
    return x, hidden


if __name__ == "__main__":
    # TODO(synk): encoder_type='lstm' branch of the original module is not
    #             implemented (the spec is exercised with the GRU path).
    configs = [
        # (B, T, H, num_layers)
        (2, 24, 32, 1),   # T=24 -> TT=8, 3 time blocks: exercises scratch carry
        (2, 8, 32, 2),    # num_layers loop reusing the same cell
    ]
    key = jax.random.PRNGKey(0)
    for (B, T, H, L) in configs:
        key, kx, kh, kp = jax.random.split(key, 4)
        x = jax.random.normal(kx, (B, T, H), jnp.float32)        # batch_first input
        hidden = jax.random.normal(kh, (1, B, H), jnp.float32)   # (layers*dirs, B, H)

        enc = EncoderRNNPallas(input_size=H, hidden_size=H, num_layers=L, key=kp)

        y, h_out = enc(x, hidden)
        y = jax.block_until_ready(y)
        h_out = jax.block_until_ready(h_out)

        # sanity check against the pure-JAX f32 reference (bf16 matmuls inside
        # the kernel -> relaxed tolerance)
        y_ref, h_ref = _gru_reference(x, hidden, enc.w_ih, enc.w_hh, enc.b_ih,
                                      enc.b_hh, L)
        np.testing.assert_allclose(np.asarray(y), np.asarray(y_ref),
                                   rtol=3e-2, atol=3e-2)
        np.testing.assert_allclose(np.asarray(h_out), np.asarray(h_ref),
                                   rtol=3e-2, atol=3e-2)
        assert y.shape == (B, T, H) and h_out.shape == (1, B, H)

    print("KERNEL_OK")
</pallas_src>

<mosaic_0001>
module attributes {stable_mosaic.version = 11 : i64} {
  func.func @_gru_recurrence_kernel(%arg0: i32, %arg1: i32, %arg2: memref<2x8x384xbf16, #tpu.memory_space<vmem>>, %arg3: memref<2x128xf32, #tpu.memory_space<vmem>>, %arg4: memref<128x384xbf16, #tpu.memory_space<vmem>>, %arg5: memref<1x128xf32, #tpu.memory_space<vmem>>, %arg6: memref<2x8x128xf32, #tpu.memory_space<vmem>>, %arg7: memref<2x128xf32, #tpu.memory_space<vmem>>) attributes {dimension_semantics = [#tpu.dimension_semantics<arbitrary>, #tpu.dimension_semantics<arbitrary>], iteration_bounds = array<i64: 1, 3>, scalar_prefetch = 0 : i64, scratch_operands = 1 : i64, tpu.core_type = #tpu.core_type<tc>, window_params = [{transform_indices = @transform_0, window_bounds = array<i64: 2, 8, 384>}, {transform_indices = @transform_1, window_bounds = array<i64: 2, 128>}, {pipeline_mode = #tpu.pipeline_mode<synchronous>, transform_indices = @transform_2, window_bounds = array<i64: 128, 384>}, {pipeline_mode = #tpu.pipeline_mode<synchronous>, transform_indices = @transform_3, window_bounds = array<i64: 1, 128>}, {transform_indices = @transform_4, window_bounds = array<i64: 2, 8, 128>}]} {
    %c0_i32 = arith.constant 0 : i32
    %0 = arith.cmpi eq, %arg1, %c0_i32 : i32
    %1 = arith.extui %0 : i1 to i32
    %c0_i32_0 = arith.constant 0 : i32
    %2 = arith.cmpi ne, %1, %c0_i32_0 : i32
    scf.if %2 {
      %c0_72 = arith.constant 0 : index
      %c0_73 = arith.constant 0 : index
      %273 = vector.load %arg3[%c0_72, %c0_73] : memref<2x128xf32, #tpu.memory_space<vmem>>, vector<2x128xf32>
      %c0_74 = arith.constant 0 : index
      %c0_75 = arith.constant 0 : index
      %274 = vector.load %arg7[%c0_74, %c0_75] : memref<2x128xf32, #tpu.memory_space<vmem>>, vector<2x128xf32>
      tpu.vector_store %arg7[%c0_74, %c0_75], %273 {strides = array<i32>} : memref<2x128xf32, #tpu.memory_space<vmem>>, vector<2x128xf32>,
    } else {
    }
    %c0 = arith.constant 0 : index
    %c0_1 = arith.constant 0 : index
    %3 = vector.load %arg7[%c0, %c0_1] : memref<2x128xf32, #tpu.memory_space<vmem>>, vector<2x128xf32>
    %c0_2 = arith.constant 0 : index
    %c0_3 = arith.constant 0 : index
    %4 = vector.load %arg4[%c0_2, %c0_3] : memref<128x384xbf16, #tpu.memory_space<vmem>>, vector<128x384xbf16>
    %c0_4 = arith.constant 0 : index
    %c0_5 = arith.constant 0 : index
    %5 = vector.load %arg5[%c0_4, %c0_5] : memref<1x128xf32, #tpu.memory_space<vmem>>, vector<1x128xf32>
    %6 = vector.shape_cast %5 : vector<1x128xf32> to vector<1x128xf32>
    %7 = vector.broadcast %6 : vector<1x128xf32> to vector<2x128xf32>
    %c0_6 = arith.constant 0 : index
    %c0_7 = arith.constant 0 : index
    %c0_8 = arith.constant 0 : index
    %8 = vector.load %arg2[%c0_6, %c0_7, %c0_8] : memref<2x8x384xbf16, #tpu.memory_space<vmem>>, vector<2x1x384xbf16>
    %9 = vector.shape_cast %8 : vector<2x1x384xbf16> to vector<2x384xbf16>
    %10 = arith.extf %9 : vector<2x384xbf16> to vector<2x384xf32>
    %11 = arith.truncf %3 : vector<2x128xf32> to vector<2x128xbf16>
    %cst = arith.constant dense<0.000000e+00> : vector<2x384xf32>
    %12 = tpu.matmul %11, %4, %cst {dimension_numbers = #tpu.dot_dimension_numbers<[1], [0], [0], [1], [0, 0, 1, 1], [], []>} : vector<2x128xbf16>, vector<128x384xbf16>, vector<2x384xf32> -> vector<2x384xf32>
    %13 = vector.extract_strided_slice %10 {offsets = [0, 0], sizes = [2, 128], strides = [1, 1]} : vector<2x384xf32> to vector<2x128xf32>
    %14 = vector.extract_strided_slice %12 {offsets = [0, 0], sizes = [2, 128], strides = [1, 1]} : vector<2x384xf32> to vector<2x128xf32>
    %15 = arith.addf %13, %14 : vector<2x128xf32>
    %16 = arith.negf %15 : vector<2x128xf32>
    %17 = math.exp %16 : vector<2x128xf32>
    %cst_9 = arith.constant 1.000000e+00 : f32
    %18 = vector.broadcast %cst_9 : f32 to vector<2x128xf32>
    %19 = arith.addf %18, %17 : vector<2x128xf32>
    %20 = arith.divf %18, %19 : vector<2x128xf32>
    %21 = vector.extract_strided_slice %10 {offsets = [0, 128], sizes = [2, 128], strides = [1, 1]} : vector<2x384xf32> to vector<2x128xf32>
    %22 = vector.extract_strided_slice %12 {offsets = [0, 128], sizes = [2, 128], strides = [1, 1]} : vector<2x384xf32> to vector<2x128xf32>
    %23 = arith.addf %21, %22 : vector<2x128xf32>
    %24 = arith.negf %23 : vector<2x128xf32>
    %25 = math.exp %24 : vector<2x128xf32>
    %cst_10 = arith.constant 1.000000e+00 : f32
    %26 = vector.broadcast %cst_10 : f32 to vector<2x128xf32>
    %27 = arith.addf %26, %25 : vector<2x128xf32>
    %28 = arith.divf %26, %27 : vector<2x128xf32>
    %29 = vector.extract_strided_slice %10 {offsets = [0, 256], sizes = [2, 128], strides = [1, 1]} : vector<2x384xf32> to vector<2x128xf32>
    %30 = vector.extract_strided_slice %12 {offsets = [0, 256], sizes = [2, 128], strides = [1, 1]} : vector<2x384xf32> to vector<2x128xf32>
    %31 = arith.addf %30, %7 : vector<2x128xf32>
    %32 = arith.mulf %20, %31 : vector<2x128xf32>
    %33 = arith.addf %29, %32 : vector<2x128xf32>
    %34 = math.tanh %33 : vector<2x128xf32>
    %35 = arith.subf %3, %34 : vector<2x128xf32>
    %36 = arith.mulf %28, %35 : vector<2x128xf32>
    %37 = arith.addf %34, %36 : vector<2x128xf32>
    %c0_11 = arith.constant 0 : index
    %c0_12 = arith.constant 0 : index
    %c0_13 = arith.constant 0 : index
    %38 = vector.load %arg6[%c0_11, %c0_12, %c0_13] : memref<2x8x128xf32, #tpu.memory_space<vmem>>, vector<2x1x128xf32>
    %39 = vector.shape_cast %38 : vector<2x1x128xf32> to vector<2x128xf32>
    %40 = vector.shape_cast %37 : vector<2x128xf32> to vector<2x1x128xf32>
    tpu.vector_store %arg6[%c0_11, %c0_12, %c0_13], %40 {strides = array<i32>} : memref<2x8x128xf32, #tpu.memory_space<vmem>>, vector<2x1x128xf32>,
    %c0_14 = arith.constant 0 : index
    %c1 = arith.constant 1 : index
    %c0_15 = arith.constant 0 : index
    %41 = vector.load %arg2[%c0_14, %c1, %c0_15] : memref<2x8x384xbf16, #tpu.memory_space<vmem>>, vector<2x1x384xbf16>
    %42 = vector.shape_cast %41 : vector<2x1x384xbf16> to vector<2x384xbf16>
    %43 = arith.extf %42 : vector<2x384xbf16> to vector<2x384xf32>
    %44 = arith.truncf %37 : vector<2x128xf32> to vector<2x128xbf16>
    %cst_16 = arith.constant dense<0.000000e+00> : vector<2x384xf32>
    %45 = tpu.matmul %44, %4, %cst_16 {dimension_numbers = #tpu.dot_dimension_numbers<[1], [0], [0], [1], [0, 0, 1, 1], [], []>} : vector<2x128xbf16>, vector<128x384xbf16>, vector<2x384xf32> -> vector<2x384xf32>
    %46 = vector.extract_strided_slice %43 {offsets = [0, 0], sizes = [2, 128], strides = [1, 1]} : vector<2x384xf32> to vector<2x128xf32>
    %47 = vector.extract_strided_slice %45 {offsets = [0, 0], sizes = [2, 128], strides = [1, 1]} : vector<2x384xf32> to vector<2x128xf32>
    %48 = arith.addf %46, %47 : vector<2x128xf32>
    %49 = arith.negf %48 : vector<2x128xf32>
    %50 = math.exp %49 : vector<2x128xf32>
    %cst_17 = arith.constant 1.000000e+00 : f32
    %51 = vector.broadcast %cst_17 : f32 to vector<2x128xf32>
    %52 = arith.addf %51, %50 : vector<2x128xf32>
    %53 = arith.divf %51, %52 : vector<2x128xf32>
    %54 = vector.extract_strided_slice %43 {offsets = [0, 128], sizes = [2, 128], strides = [1, 1]} : vector<2x384xf32> to vector<2x128xf32>
    %55 = vector.extract_strided_slice %45 {offsets = [0, 128], sizes = [2, 128], strides = [1, 1]} : vector<2x384xf32> to vector<2x128xf32>
    %56 = arith.addf %54, %55 : vector<2x128xf32>
    %57 = arith.negf %56 : vector<2x128xf32>
    %58 = math.exp %57 : vector<2x128xf32>
    %cst_18 = arith.constant 1.000000e+00 : f32
    %59 = vector.broadcast %cst_18 : f32 to vector<2x128xf32>
    %60 = arith.addf %59, %58 : vector<2x128xf32>
    %61 = arith.divf %59, %60 : vector<2x128xf32>
    %62 = vector.extract_strided_slice %43 {offsets = [0, 256], sizes = [2, 128], strides = [1, 1]} : vector<2x384xf32> to vector<2x128xf32>
    %63 = vector.extract_strided_slice %45 {offsets = [0, 256], sizes = [2, 128], strides = [1, 1]} : vector<2x384xf32> to vector<2x128xf32>
    %64 = arith.addf %63, %7 : vector<2x128xf32>
    %65 = arith.mulf %53, %64 : vector<2x128xf32>
    %66 = arith.addf %62, %65 : vector<2x128xf32>
    %67 = math.tanh %66 : vector<2x128xf32>
    %68 = arith.subf %37, %67 : vector<2x128xf32>
    %69 = arith.mulf %61, %68 : vector<2x128xf32>
    %70 = arith.addf %67, %69 : vector<2x128xf32>
    %c0_19 = arith.constant 0 : index
    %c1_20 = arith.constant 1 : index
    %c0_21 = arith.constant 0 : index
    %71 = vector.load %arg6[%c0_19, %c1_20, %c0_21] : memref<2x8x128xf32, #tpu.memory_space<vmem>>, vector<2x1x128xf32>
    %72 = vector.shape_cast %71 : vector<2x1x128xf32> to vector<2x128xf32>
    %73 = vector.shape_cast %70 : vector<2x128xf32> to vector<2x1x128xf32>
    tpu.vector_store %arg6[%c0_19, %c1_20, %c0_21], %73 {strides = array<i32>} : memref<2x8x128xf32, #tpu.memory_space<vmem>>, vector<2x1x128xf32>,
    %c0_22 = arith.constant 0 : index
    %c2 = arith.constant 2 : index
    %c0_23 = arith.constant 0 : index
    %74 = vector.load %arg2[%c0_22, %c2, %c0_23] : memref<2x8x384xbf16, #tpu.memory_space<vmem>>, vector<2x1x384xbf16>
    %75 = vector.shape_cast %74 : vector<2x1x384xbf16> to vector<2x384xbf16>
    %76 = arith.extf %75 : vector<2x384xbf16> to vector<2x384xf32>
    %77 = arith.truncf %70 : vector<2x128xf32> to vector<2x128xbf16>
    %cst_24 = arith.constant dense<0.000000e+00> : vector<2x384xf32>
    %78 = tpu.matmul %77, %4, %cst_24 {dimension_numbers = #tpu.dot_dimension_numbers<[1], [0], [0], [1], [0, 0, 1, 1], [], []>} : vector<2x128xbf16>, vector<128x384xbf16>, vector<2x384xf32> -> vector<2x384xf32>
    %79 = vector.extract_strided_slice %76 {offsets = [0, 0], sizes = [2, 128], strides = [1, 1]} : vector<2x384xf32> to vector<2x128xf32>
    %80 = vector.extract_strided_slice %78 {offsets = [0, 0], sizes = [2, 128], strides = [1, 1]} : vector<2x384xf32> to vector<2x128xf32>
    %81 = arith.addf %79, %80 : vector<2x128xf32>
    %82 = arith.negf %81 : vector<2x128xf32>
    %83 = math.exp %82 : vector<2x128xf32>
    %cst_25 = arith.constant 1.000000e+00 : f32
    %84 = vector.broadcast %cst_25 : f32 to vector<2x128xf32>
    %85 = arith.addf %84, %83 : vector<2x128xf32>
    %86 = arith.divf %84, %85 : vector<2x128xf32>
    %87 = vector.extract_strided_slice %76 {offsets = [0, 128], sizes = [2, 128], strides = [1, 1]} : vector<2x384xf32> to vector<2x128xf32>
    %88 = vector.extract_strided_slice %78 {offsets = [0, 128], sizes = [2, 128], strides = [1, 1]} : vector<2x384xf32> to vector<2x128xf32>
    %89 = arith.addf %87, %88 : vector<2x128xf32>
    %90 = arith.negf %89 : vector<2x128xf32>
    %91 = math.exp %90 : vector<2x128xf32>
    %cst_26 = arith.constant 1.000000e+00 : f32
    %92 = vector.broadcast %cst_26 : f32 to vector<2x128xf32>
    %93 = arith.addf %92, %91 : vector<2x128xf32>
    %94 = arith.divf %92, %93 : vector<2x128xf32>
    %95 = vector.extract_strided_slice %76 {offsets = [0, 256], sizes = [2, 128], strides = [1, 1]} : vector<2x384xf32> to vector<2x128xf32>
    %96 = vector.extract_strided_slice %78 {offsets = [0, 256], sizes = [2, 128], strides = [1, 1]} : vector<2x384xf32> to vector<2x128xf32>
    %97 = arith.addf %96, %7 : vector<2x128xf32>
    %98 = arith.mulf %86, %97 : vector<2x128xf32>
    %99 = arith.addf %95, %98 : vector<2x128xf32>
    %100 = math.tanh %99 : vector<2x128xf32>
    %101 = arith.subf %70, %100 : vector<2x128xf32>
    %102 = arith.mulf %94, %101 : vector<2x128xf32>
    %103 = arith.addf %100, %102 : vector<2x128xf32>
    %c0_27 = arith.constant 0 : index
    %c2_28 = arith.constant 2 : index
    %c0_29 = arith.constant 0 : index
    %104 = vector.load %arg6[%c0_27, %c2_28, %c0_29] : memref<2x8x128xf32, #tpu.memory_space<vmem>>, vector<2x1x128xf32>
    %105 = vector.shape_cast %104 : vector<2x1x128xf32> to vector<2x128xf32>
    %106 = vector.shape_cast %103 : vector<2x128xf32> to vector<2x1x128xf32>
    tpu.vector_store %arg6[%c0_27, %c2_28, %c0_29], %106 {strides = array<i32>} : memref<2x8x128xf32, #tpu.memory_space<vmem>>, vector<2x1x128xf32>,
    %c0_30 = arith.constant 0 : index
    %c3 = arith.constant 3 : index
    %c0_31 = arith.constant 0 : index
    %107 = vector.load %arg2[%c0_30, %c3, %c0_31] : memref<2x8x384xbf16, #tpu.memory_space<vmem>>, vector<2x1x384xbf16>
    %108 = vector.shape_cast %107 : vector<2x1x384xbf16> to vector<2x384xbf16>
    %109 = arith.extf %108 : vector<2x384xbf16> to vector<2x384xf32>
    %110 = arith.truncf %103 : vector<2x128xf32> to vector<2x128xbf16>
    %cst_32 = arith.constant dense<0.000000e+00> : vector<2x384xf32>
    %111 = tpu.matmul %110, %4, %cst_32 {dimension_numbers = #tpu.dot_dimension_numbers<[1], [0], [0], [1], [0, 0, 1, 1], [], []>} : vector<2x128xbf16>, vector<128x384xbf16>, vector<2x384xf32> -> vector<2x384xf32>
    %112 = vector.extract_strided_slice %109 {offsets = [0, 0], sizes = [2, 128], strides = [1, 1]} : vector<2x384xf32> to vector<2x128xf32>
    %113 = vector.extract_strided_slice %111 {offsets = [0, 0], sizes = [2, 128], strides = [1, 1]} : vector<2x384xf32> to vector<2x128xf32>
    %114 = arith.addf %112, %113 : vector<2x128xf32>
    %115 = arith.negf %114 : vector<2x128xf32>
    %116 = math.exp %115 : vector<2x128xf32>
    %cst_33 = arith.constant 1.000000e+00 : f32
    %117 = vector.broadcast %cst_33 : f32 to vector<2x128xf32>
    %118 = arith.addf %117, %116 : vector<2x128xf32>
    %119 = arith.divf %117, %118 : vector<2x128xf32>
    %120 = vector.extract_strided_slice %109 {offsets = [0, 128], sizes = [2, 128], strides = [1, 1]} : vector<2x384xf32> to vector<2x128xf32>
    %121 = vector.extract_strided_slice %111 {offsets = [0, 128], sizes = [2, 128], strides = [1, 1]} : vector<2x384xf32> to vector<2x128xf32>
    %122 = arith.addf %120, %121 : vector<2x128xf32>
    %123 = arith.negf %122 : vector<2x128xf32>
    %124 = math.exp %123 : vector<2x128xf32>
    %cst_34 = arith.constant 1.000000e+00 : f32
    %125 = vector.broadcast %cst_34 : f32 to vector<2x128xf32>
    %126 = arith.addf %125, %124 : vector<2x128xf32>
    %127 = arith.divf %125, %126 : vector<2x128xf32>
    %128 = vector.extract_strided_slice %109 {offsets = [0, 256], sizes = [2, 128], strides = [1, 1]} : vector<2x384xf32> to vector<2x128xf32>
    %129 = vector.extract_strided_slice %111 {offsets = [0, 256], sizes = [2, 128], strides = [1, 1]} : vector<2x384xf32> to vector<2x128xf32>
    %130 = arith.addf %129, %7 : vector<2x128xf32>
    %131 = arith.mulf %119, %130 : vector<2x128xf32>
    %132 = arith.addf %128, %131 : vector<2x128xf32>
    %133 = math.tanh %132 : vector<2x128xf32>
    %134 = arith.subf %103, %133 : vector<2x128xf32>
    %135 = arith.mulf %127, %134 : vector<2x128xf32>
    %136 = arith.addf %133, %135 : vector<2x128xf32>
    %c0_35 = arith.constant 0 : index
    %c3_36 = arith.constant 3 : index
    %c0_37 = arith.constant 0 : index
    %137 = vector.load %arg6[%c0_35, %c3_36, %c0_37] : memref<2x8x128xf32, #tpu.memory_space<vmem>>, vector<2x1x128xf32>
    %138 = vector.shape_cast %137 : vector<2x1x128xf32> to vector<2x128xf32>
    %139 = vector.shape_cast %136 : vector<2x128xf32> to vector<2x1x128xf32>
    tpu.vector_store %arg6[%c0_35, %c3_36, %c0_37], %139 {strides = array<i32>} : memref<2x8x128xf32, #tpu.memory_space<vmem>>, vector<2x1x128xf32>,
    %c0_38 = arith.constant 0 : index
    %c4 = arith.constant 4 : index
    %c0_39 = arith.constant 0 : index
    %140 = vector.load %arg2[%c0_38, %c4, %c0_39] : memref<2x8x384xbf16, #tpu.memory_space<vmem>>, vector<2x1x384xbf16>
    %141 = vector.shape_cast %140 : vector<2x1x384xbf16> to vector<2x384xbf16>
    %142 = arith.extf %141 : vector<2x384xbf16> to vector<2x384xf32>
    %143 = arith.truncf %136 : vector<2x128xf32> to vector<2x128xbf16>
    %cst_40 = arith.constant dense<0.000000e+00> : vector<2x384xf32>
    %144 = tpu.matmul %143, %4, %cst_40 {dimension_numbers = #tpu.dot_dimension_numbers<[1], [0], [0], [1], [0, 0, 1, 1], [], []>} : vector<2x128xbf16>, vector<128x384xbf16>, vector<2x384xf32> -> vector<2x384xf32>
    %145 = vector.extract_strided_slice %142 {offsets = [0, 0], sizes = [2, 128], strides = [1, 1]} : vector<2x384xf32> to vector<2x128xf32>
    %146 = vector.extract_strided_slice %144 {offsets = [0, 0], sizes = [2, 128], strides = [1, 1]} : vector<2x384xf32> to vector<2x128xf32>
    %147 = arith.addf %145, %146 : vector<2x128xf32>
    %148 = arith.negf %147 : vector<2x128xf32>
    %149 = math.exp %148 : vector<2x128xf32>
    %cst_41 = arith.constant 1.000000e+00 : f32
    %150 = vector.broadcast %cst_41 : f32 to vector<2x128xf32>
    %151 = arith.addf %150, %149 : vector<2x128xf32>
    %152 = arith.divf %150, %151 : vector<2x128xf32>
    %153 = vector.extract_strided_slice %142 {offsets = [0, 128], sizes = [2, 128], strides = [1, 1]} : vector<2x384xf32> to vector<2x128xf32>
    %154 = vector.extract_strided_slice %144 {offsets = [0, 128], sizes = [2, 128], strides = [1, 1]} : vector<2x384xf32> to vector<2x128xf32>
    %155 = arith.addf %153, %154 : vector<2x128xf32>
    %156 = arith.negf %155 : vector<2x128xf32>
    %157 = math.exp %156 : vector<2x128xf32>
    %cst_42 = arith.constant 1.000000e+00 : f32
    %158 = vector.broadcast %cst_42 : f32 to vector<2x128xf32>
    %159 = arith.addf %158, %157 : vector<2x128xf32>
    %160 = arith.divf %158, %159 : vector<2x128xf32>
    %161 = vector.extract_strided_slice %142 {offsets = [0, 256], sizes = [2, 128], strides = [1, 1]} : vector<2x384xf32> to vector<2x128xf32>
    %162 = vector.extract_strided_slice %144 {offsets = [0, 256], sizes = [2, 128], strides = [1, 1]} : vector<2x384xf32> to vector<2x128xf32>
    %163 = arith.addf %162, %7 : vector<2x128xf32>
    %164 = arith.mulf %152, %163 : vector<2x128xf32>
    %165 = arith.addf %161, %164 : vector<2x128xf32>
    %166 = math.tanh %165 : vector<2x128xf32>
    %167 = arith.subf %136, %166 : vector<2x128xf32>
    %168 = arith.mulf %160, %167 : vector<2x128xf32>
    %169 = arith.addf %166, %168 : vector<2x128xf32>
    %c0_43 = arith.constant 0 : index
    %c4_44 = arith.constant 4 : index
    %c0_45 = arith.constant 0 : index
    %170 = vector.load %arg6[%c0_43, %c4_44, %c0_45] : memref<2x8x128xf32, #tpu.memory_space<vmem>>, vector<2x1x128xf32>
    %171 = vector.shape_cast %170 : vector<2x1x128xf32> to vector<2x128xf32>
    %172 = vector.shape_cast %169 : vector<2x128xf32> to vector<2x1x128xf32>
    tpu.vector_store %arg6[%c0_43, %c4_44, %c0_45], %172 {strides = array<i32>} : memref<2x8x128xf32, #tpu.memory_space<vmem>>, vector<2x1x128xf32>,
    %c0_46 = arith.constant 0 : index
    %c5 = arith.constant 5 : index
    %c0_47 = arith.constant 0 : index
    %173 = vector.load %arg2[%c0_46, %c5, %c0_47] : memref<2x8x384xbf16, #tpu.memory_space<vmem>>, vector<2x1x384xbf16>
    %174 = vector.shape_cast %173 : vector<2x1x384xbf16> to vector<2x384xbf16>
    %175 = arith.extf %174 : vector<2x384xbf16> to vector<2x384xf32>
    %176 = arith.truncf %169 : vector<2x128xf32> to vector<2x128xbf16>
    %cst_48 = arith.constant dense<0.000000e+00> : vector<2x384xf32>
    %177 = tpu.matmul %176, %4, %cst_48 {dimension_numbers = #tpu.dot_dimension_numbers<[1], [0], [0], [1], [0, 0, 1, 1], [], []>} : vector<2x128xbf16>, vector<128x384xbf16>, vector<2x384xf32> -> vector<2x384xf32>
    %178 = vector.extract_strided_slice %175 {offsets = [0, 0], sizes = [2, 128], strides = [1, 1]} : vector<2x384xf32> to vector<2x128xf32>
    %179 = vector.extract_strided_slice %177 {offsets = [0, 0], sizes = [2, 128], strides = [1, 1]} : vector<2x384xf32> to vector<2x128xf32>
    %180 = arith.addf %178, %179 : vector<2x128xf32>
    %181 = arith.negf %180 : vector<2x128xf32>
    %182 = math.exp %181 : vector<2x128xf32>
    %cst_49 = arith.constant 1.000000e+00 : f32
    %183 = vector.broadcast %cst_49 : f32 to vector<2x128xf32>
    %184 = arith.addf %183, %182 : vector<2x128xf32>
    %185 = arith.divf %183, %184 : vector<2x128xf32>
    %186 = vector.extract_strided_slice %175 {offsets = [0, 128], sizes = [2, 128], strides = [1, 1]} : vector<2x384xf32> to vector<2x128xf32>
    %187 = vector.extract_strided_slice %177 {offsets = [0, 128], sizes = [2, 128], strides = [1, 1]} : vector<2x384xf32> to vector<2x128xf32>
    %188 = arith.addf %186, %187 : vector<2x128xf32>
    %189 = arith.negf %188 : vector<2x128xf32>
    %190 = math.exp %189 : vector<2x128xf32>
    %cst_50 = arith.constant 1.000000e+00 : f32
    %191 = vector.broadcast %cst_50 : f32 to vector<2x128xf32>
    %192 = arith.addf %191, %190 : vector<2x128xf32>
    %193 = arith.divf %191, %192 : vector<2x128xf32>
    %194 = vector.extract_strided_slice %175 {offsets = [0, 256], sizes = [2, 128], strides = [1, 1]} : vector<2x384xf32> to vector<2x128xf32>
    %195 = vector.extract_strided_slice %177 {offsets = [0, 256], sizes = [2, 128], strides = [1, 1]} : vector<2x384xf32> to vector<2x128xf32>
    %196 = arith.addf %195, %7 : vector<2x128xf32>
    %197 = arith.mulf %185, %196 : vector<2x128xf32>
    %198 = arith.addf %194, %197 : vector<2x128xf32>
    %199 = math.tanh %198 : vector<2x128xf32>
    %200 = arith.subf %169, %199 : vector<2x128xf32>
    %201 = arith.mulf %193, %200 : vector<2x128xf32>
    %202 = arith.addf %199, %201 : vector<2x128xf32>
    %c0_51 = arith.constant 0 : index
    %c5_52 = arith.constant 5 : index
    %c0_53 = arith.constant 0 : index
    %203 = vector.load %arg6[%c0_51, %c5_52, %c0_53] : memref<2x8x128xf32, #tpu.memory_space<vmem>>, vector<2x1x128xf32>
    %204 = vector.shape_cast %203 : vector<2x1x128xf32> to vector<2x128xf32>
    %205 = vector.shape_cast %202 : vector<2x128xf32> to vector<2x1x128xf32>
    tpu.vector_store %arg6[%c0_51, %c5_52, %c0_53], %205 {strides = array<i32>} : memref<2x8x128xf32, #tpu.memory_space<vmem>>, vector<2x1x128xf32>,
    %c0_54 = arith.constant 0 : index
    %c6 = arith.constant 6 : index
    %c0_55 = arith.constant 0 : index
    %206 = vector.load %arg2[%c0_54, %c6, %c0_55] : memref<2x8x384xbf16, #tpu.memory_space<vmem>>, vector<2x1x384xbf16>
    %207 = vector.shape_cast %206 : vector<2x1x384xbf16> to vector<2x384xbf16>
    %208 = arith.extf %207 : vector<2x384xbf16> to vector<2x384xf32>
    %209 = arith.truncf %202 : vector<2x128xf32> to vector<2x128xbf16>
    %cst_56 = arith.constant dense<0.000000e+00> : vector<2x384xf32>
    %210 = tpu.matmul %209, %4, %cst_56 {dimension_numbers = #tpu.dot_dimension_numbers<[1], [0], [0], [1], [0, 0, 1, 1], [], []>} : vector<2x128xbf16>, vector<128x384xbf16>, vector<2x384xf32> -> vector<2x384xf32>
    %211 = vector.extract_strided_slice %208 {offsets = [0, 0], sizes = [2, 128], strides = [1, 1]} : vector<2x384xf32> to vector<2x128xf32>
    %212 = vector.extract_strided_slice %210 {offsets = [0, 0], sizes = [2, 128], strides = [1, 1]} : vector<2x384xf32> to vector<2x128xf32>
    %213 = arith.addf %211, %212 : vector<2x128xf32>
    %214 = arith.negf %213 : vector<2x128xf32>
    %215 = math.exp %214 : vector<2x128xf32>
    %cst_57 = arith.constant 1.000000e+00 : f32
    %216 = vector.broadcast %cst_57 : f32 to vector<2x128xf32>
    %217 = arith.addf %216, %215 : vector<2x128xf32>
    %218 = arith.divf %216, %217 : vector<2x128xf32>
    %219 = vector.extract_strided_slice %208 {offsets = [0, 128], sizes = [2, 128], strides = [1, 1]} : vector<2x384xf32> to vector<2x128xf32>
    %220 = vector.extract_strided_slice %210 {offsets = [0, 128], sizes = [2, 128], strides = [1, 1]} : vector<2x384xf32> to vector<2x128xf32>
    %221 = arith.addf %219, %220 : vector<2x128xf32>
    %222 = arith.negf %221 : vector<2x128xf32>
    %223 = math.exp %222 : vector<2x128xf32>
    %cst_58 = arith.constant 1.000000e+00 : f32
    %224 = vector.broadcast %cst_58 : f32 to vector<2x128xf32>
    %225 = arith.addf %224, %223 : vector<2x128xf32>
    %226 = arith.divf %224, %225 : vector<2x128xf32>
    %227 = vector.extract_strided_slice %208 {offsets = [0, 256], sizes = [2, 128], strides = [1, 1]} : vector<2x384xf32> to vector<2x128xf32>
    %228 = vector.extract_strided_slice %210 {offsets = [0, 256], sizes = [2, 128], strides = [1, 1]} : vector<2x384xf32> to vector<2x128xf32>
    %229 = arith.addf %228, %7 : vector<2x128xf32>
    %230 = arith.mulf %218, %229 : vector<2x128xf32>
    %231 = arith.addf %227, %230 : vector<2x128xf32>
    %232 = math.tanh %231 : vector<2x128xf32>
    %233 = arith.subf %202, %232 : vector<2x128xf32>
    %234 = arith.mulf %226, %233 : vector<2x128xf32>
    %235 = arith.addf %232, %234 : vector<2x128xf32>
    %c0_59 = arith.constant 0 : index
    %c6_60 = arith.constant 6 : index
    %c0_61 = arith.constant 0 : index
    %236 = vector.load %arg6[%c0_59, %c6_60, %c0_61] : memref<2x8x128xf32, #tpu.memory_space<vmem>>, vector<2x1x128xf32>
    %237 = vector.shape_cast %236 : vector<2x1x128xf32> to vector<2x128xf32>
    %238 = vector.shape_cast %235 : vector<2x128xf32> to vector<2x1x128xf32>
    tpu.vector_store %arg6[%c0_59, %c6_60, %c0_61], %238 {strides = array<i32>} : memref<2x8x128xf32, #tpu.memory_space<vmem>>, vector<2x1x128xf32>,
    %c0_62 = arith.constant 0 : index
    %c7 = arith.constant 7 : index
    %c0_63 = arith.constant 0 : index
    %239 = vector.load %arg2[%c0_62, %c7, %c0_63] : memref<2x8x384xbf16, #tpu.memory_space<vmem>>, vector<2x1x384xbf16>
    %240 = vector.shape_cast %239 : vector<2x1x384xbf16> to vector<2x384xbf16>
    %241 = arith.extf %240 : vector<2x384xbf16> to vector<2x384xf32>
    %242 = arith.truncf %235 : vector<2x128xf32> to vector<2x128xbf16>
    %cst_64 = arith.constant dense<0.000000e+00> : vector<2x384xf32>
    %243 = tpu.matmul %242, %4, %cst_64 {dimension_numbers = #tpu.dot_dimension_numbers<[1], [0], [0], [1], [0, 0, 1, 1], [], []>} : vector<2x128xbf16>, vector<128x384xbf16>, vector<2x384xf32> -> vector<2x384xf32>
    %244 = vector.extract_strided_slice %241 {offsets = [0, 0], sizes = [2, 128], strides = [1, 1]} : vector<2x384xf32> to vector<2x128xf32>
    %245 = vector.extract_strided_slice %243 {offsets = [0, 0], sizes = [2, 128], strides = [1, 1]} : vector<2x384xf32> to vector<2x128xf32>
    %246 = arith.addf %244, %245 : vector<2x128xf32>
    %247 = arith.negf %246 : vector<2x128xf32>
    %248 = math.exp %247 : vector<2x128xf32>
    %cst_65 = arith.constant 1.000000e+00 : f32
    %249 = vector.broadcast %cst_65 : f32 to vector<2x128xf32>
    %250 = arith.addf %249, %248 : vector<2x128xf32>
    %251 = arith.divf %249, %250 : vector<2x128xf32>
    %252 = vector.extract_strided_slice %241 {offsets = [0, 128], sizes = [2, 128], strides = [1, 1]} : vector<2x384xf32> to vector<2x128xf32>
    %253 = vector.extract_strided_slice %243 {offsets = [0, 128], sizes = [2, 128], strides = [1, 1]} : vector<2x384xf32> to vector<2x128xf32>
    %254 = arith.addf %252, %253 : vector<2x128xf32>
    %255 = arith.negf %254 : vector<2x128xf32>
    %256 = math.exp %255 : vector<2x128xf32>
    %cst_66 = arith.constant 1.000000e+00 : f32
    %257 = vector.broadcast %cst_66 : f32 to vector<2x128xf32>
    %258 = arith.addf %257, %256 : vector<2x128xf32>
    %259 = arith.divf %257, %258 : vector<2x128xf32>
    %260 = vector.extract_strided_slice %241 {offsets = [0, 256], sizes = [2, 128], strides = [1, 1]} : vector<2x384xf32> to vector<2x128xf32>
    %261 = vector.extract_strided_slice %243 {offsets = [0, 256], sizes = [2, 128], strides = [1, 1]} : vector<2x384xf32> to vector<2x128xf32>
    %262 = arith.addf %261, %7 : vector<2x128xf32>
    %263 = arith.mulf %251, %262 : vector<2x128xf32>
    %264 = arith.addf %260, %263 : vector<2x128xf32>
    %265 = math.tanh %264 : vector<2x128xf32>
    %266 = arith.subf %235, %265 : vector<2x128xf32>
    %267 = arith.mulf %259, %266 : vector<2x128xf32>
    %268 = arith.addf %265, %267 : vector<2x128xf32>
    %c0_67 = arith.constant 0 : index
    %c7_68 = arith.constant 7 : index
    %c0_69 = arith.constant 0 : index
    %269 = vector.load %arg6[%c0_67, %c7_68, %c0_69] : memref<2x8x128xf32, #tpu.memory_space<vmem>>, vector<2x1x128xf32>
    %270 = vector.shape_cast %269 : vector<2x1x128xf32> to vector<2x128xf32>
    %271 = vector.shape_cast %268 : vector<2x128xf32> to vector<2x1x128xf32>
    tpu.vector_store %arg6[%c0_67, %c7_68, %c0_69], %271 {strides = array<i32>} : memref<2x8x128xf32, #tpu.memory_space<vmem>>, vector<2x1x128xf32>,
    %c0_70 = arith.constant 0 : index
    %c0_71 = arith.constant 0 : index
    %272 = vector.load %arg7[%c0_70, %c0_71] : memref<2x128xf32, #tpu.memory_space<vmem>>, vector<2x128xf32>
    tpu.vector_store %arg7[%c0_70, %c0_71], %268 {strides = array<i32>} : memref<2x128xf32, #tpu.memory_space<vmem>>, vector<2x128xf32>,
    return
  }
  func.func @transform_0(%arg0: i32, %arg1: i32) -> (i32, i32, i32) {
    %c0_i32 = arith.constant 0 : i32
    %c0_i32_0 = arith.constant 0 : i32
    return %arg0, %arg1, %c0_i32 : i32, i32, i32
  }
  func.func @transform_1(%arg0: i32, %arg1: i32) -> (i32, i32) {
    %c0_i32 = arith.constant 0 : i32
    %c0_i32_0 = arith.constant 0 : i32
    return %arg0, %c0_i32 : i32, i32
  }
  func.func @transform_2(%arg0: i32, %arg1: i32) -> (i32, i32) {
    %c0_i32 = arith.constant 0 : i32
    %c0_i32_0 = arith.constant 0 : i32
    %c0_i32_1 = arith.constant 0 : i32
    return %c0_i32, %c0_i32_0 : i32, i32
  }
  func.func @transform_3(%arg0: i32, %arg1: i32) -> (i32, i32) {
    %c0_i32 = arith.constant 0 : i32
    %c0_i32_0 = arith.constant 0 : i32
    %c0_i32_1 = arith.constant 0 : i32
    return %c0_i32, %c0_i32_0 : i32, i32
  }
  func.func @transform_4(%arg0: i32, %arg1: i32) -> (i32, i32, i32) {
    %c0_i32 = arith.constant 0 : i32
    %c0_i32_0 = arith.constant 0 : i32
    return %arg0, %arg1, %c0_i32 : i32, i32, i32
  }
}

</mosaic_0001>

<llo_original>
// kernel: tpu_custom_call.1
$region0: #{tpu_custom_call.1}
  #allocation0 [shape = 'u32[]', space=smem, size = 0x4, offset = 0x4, fixed_abs, tag = 'smem constant byte address 0x4 - core index']
  #allocation1 [shape = 'u32[144,128]{1,0:T(1,128)}', space=vmem, size = 0x12000, scoped, tag = 'internal scratch']
  #allocation2 [shape = 'f32[2,128]{1,0:T(2,128)}', space=vmem, size = 0x400, scoped, tag = 'scratch operand']
  %s0 = inlined_call_operand.hbm [shape: bf16[2,24,384], index: 0, kind: input, shape index: {}]
  %s1 = inlined_call_operand.vmem [shape: f32[2,128], index: 1, kind: input, shape index: {}]
  %s2 = inlined_call_operand.hbm [shape: bf16[128,384], index: 2, kind: input, shape index: {}]
  %s3 = inlined_call_operand.vmem [shape: f32[1,128], index: 3, kind: input, shape index: {}]
  %s4 = inlined_call_operand.hbm [shape: f32[2,24,128], index: 4, kind: output, shape index: {}]
  %s5 = sld [smem:[#allocation0]]
  $region61: #{tpu_custom_call.1} parent=0
    _
  %s7 = ssub.s32 1, %s5
  %s8 = scalar_select 0, %s7, %s5
  $region1: #{tpu_custom_call.1} parent=0
    #allocation3 [shape = 'u8[24576]{0}', space=vmem, size = 0x6000, scoped, tag = 'input window, operand 0']
    #allocation4 [shape = 's32[2]{0}', space=sflag, size = 0x8, scoped, tag = 'scoped memory for tpu_custom_call.1']
    #allocation5 [shape = 's32[2]{0}', space=sflag, size = 0x8, scoped, tag = 'scoped memory for tpu_custom_call.1']
    #allocation6 [shape = 'u8[98304]{0}', space=vmem, size = 0x18000, scoped, tag = 'input window, operand 2, single buffered']
    #allocation7 [shape = 's32[1]{0}', space=sflag, size = 0x4, scoped, tag = 'scoped memory for tpu_custom_call.1']
    #allocation8 [shape = 'u8[16384]{0}', space=vmem, size = 0x4000, scoped, tag = 'output window, operand 0']
    %9 = vsyncpa [#allocation4], 0
    %s10 = scalar_lea.sflag [#allocation4], 1
    %11 = vsyncpa %s10, 0
    %12 = vsyncpa [#allocation7], 0
    %13 = vsyncpa [#allocation5], 0
    %s14 = scalar_lea.sflag [#allocation5], 1
    %15 = vsyncpa %s14, 0
    loop: start=0, step=1, limit=5
    $region2: #{tpu_custom_call.1} parent=1 // loop_pre_header
      _
    $region3: #{tpu_custom_call.1} parent=1 // loop_header
      %s17 = sphi 0, %s21
      %p18 = scmp.ge.s32.totalorder %s17, 5
      %s24 = sphi 0, %s36
      %s25 = sphi 0, %s32
      %s26 = sphi 0, %s24
      %s27 = sphi 0, %s25
      %s28 = sphi 0, %s26
      %s29 = sphi 0, %s27
      %s41 = sphi 0, %s43
      %s44 = sphi 0, %s41
      %s45 = sphi 0, %s44
      %s61 = sphi 0, %s45
      %s67 = sphi 0, %s69
      %s70 = sphi 0, %s67
      %s71 = sphi 0, %s70
      %s87 = sphi 0, %s71
      %s91 = sphi 0, %s91
      %s93 = sphi 0, %s91
      %s94 = sphi 0, %s93
      %s108 = sphi 0, %s94
      %s112 = sphi 0, %s112
      %s114 = sphi 0, %s112
      %s115 = sphi 0, %s114
      %s129 = sphi 0, %s115
      %s137 = sphi 0, %s139
      %s140 = sphi 0, %s137
      %s141 = sphi 0, %s140
      %s157 = sphi 0, %s141
    $region4: #{tpu_custom_call.1} parent=1 // loop_header_branch
      %20 = sbr.rel (%p18) target = $region8
    $region5: #{tpu_custom_call.1} parent=1 // loop_body
      %s22 = ssub.s32 %s17, 1
      %s23 = ssub.s32 %s17, 2
      %s30 = sadd.s32 1, %s25
      %p31 = scmp.ge.s32.totalorder %s30, 3
      %s32 = scalar_select %p31, 0, %s30
      %s33 = sadd.s32 1, %s24
      %s34 = scalar_select %p31, %s33, %s24
      %p35 = scmp.ge.s32.totalorder %s34, 1
      %s36 = scalar_select %p35, 0, %s34
      %s37 = ssub.s32 %s24, %s36
      %s38 = ssub.s32 %s25, %s32
      %s39 = sor.u32 %s37, %s38
      %p40 = scmp.eq.s32.totalorder %s39, 0
      %s42 = sadd.s32 %s41, 1
      %s43 = scalar_select %p40, %s41, %s42
      %p46 = pneg %p40
      %p47 = scmp.eq.s32.totalorder %s17, 2
      %p48 = por %p46, %p47
      %p49 = scmp.ne.s32.totalorder %s41, %s44
      %p50 = scmp.eq.s32.totalorder %s17, 0
      %p51 = por %p49, %p50
      %p52 = scmp.ne.s32.totalorder %s41, %s44
      %p53 = scmp.eq.s32.totalorder %s22, 2
      %p54 = por %p52, %p53
      %p55 = scmp.ne.s32.totalorder %s44, %s45
      %p56 = scmp.eq.s32.totalorder %s22, 0
      %p57 = por %p55, %p56
      %p58 = scmp.ne.s32.totalorder %s44, %s45
      %p59 = scmp.eq.s32.totalorder %s23, 2
      %p60 = por %p58, %p59
      %p62 = scmp.ne.s32.totalorder %s45, %s61
      %p63 = scmp.eq.s32.totalorder %s23, 0
      %p64 = por %p62, %p63
      %s65 = ssub.s32 %s24, %s36
      %p66 = scmp.eq.s32.totalorder %s65, 0
      %s68 = sadd.s32 %s67, 1
      %s69 = scalar_select %p66, %s67, %s68
      %p72 = pneg %p66
      %p73 = scmp.eq.s32.totalorder %s17, 2
      %p74 = por %p72, %p73
      %p75 = scmp.ne.s32.totalorder %s67, %s70
      %p76 = scmp.eq.s32.totalorder %s17, 0
      %p77 = por %p75, %p76
      %p78 = scmp.ne.s32.totalorder %s67, %s70
      %p79 = scmp.eq.s32.totalorder %s22, 2
      %p80 = por %p78, %p79
      %p81 = scmp.ne.s32.totalorder %s70, %s71
      %p82 = scmp.eq.s32.totalorder %s22, 0
      %p83 = por %p81, %p82
      %p84 = scmp.ne.s32.totalorder %s70, %s71
      %p85 = scmp.eq.s32.totalorder %s23, 2
      %p86 = por %p84, %p85
      %p88 = scmp.ne.s32.totalorder %s71, %s87
      %p89 = scmp.eq.s32.totalorder %s23, 0
      %p90 = por %p88, %p89
      %s92 = sadd.s32 %s91, 1
      %p95 = scmp.eq.s32.totalorder %s17, 2
      %p96 = scmp.ne.s32.totalorder %s91, %s93
      %p97 = scmp.eq.s32.totalorder %s17, 0
      %p98 = por %p96, %p97
      %p99 = scmp.ne.s32.totalorder %s91, %s93
      %p100 = scmp.eq.s32.totalorder %s22, 2
      %p101 = por %p99, %p100
      %p102 = scmp.ne.s32.totalorder %s93, %s94
      %p103 = scmp.eq.s32.totalorder %s22, 0
      %p104 = por %p102, %p103
      %p105 = scmp.ne.s32.totalorder %s93, %s94
      %p106 = scmp.eq.s32.totalorder %s23, 2
      %p107 = por %p105, %p106
      %p109 = scmp.ne.s32.totalorder %s94, %s108
      %p110 = scmp.eq.s32.totalorder %s23, 0
      %p111 = por %p109, %p110
      %s113 = sadd.s32 %s112, 1
      %p116 = scmp.eq.s32.totalorder %s17, 2
      %p117 = scmp.ne.s32.totalorder %s112, %s114
      %p118 = scmp.eq.s32.totalorder %s17, 0
      %p119 = por %p117, %p118
      %p120 = scmp.ne.s32.totalorder %s112, %s114
      %p121 = scmp.eq.s32.totalorder %s22, 2
      %p122 = por %p120, %p121
      %p123 = scmp.ne.s32.totalorder %s114, %s115
      %p124 = scmp.eq.s32.totalorder %s22, 0
      %p125 = por %p123, %p124
      %p126 = scmp.ne.s32.totalorder %s114, %s115
      %p127 = scmp.eq.s32.totalorder %s23, 2
      %p128 = por %p126, %p127
      %p130 = scmp.ne.s32.totalorder %s115, %s129
      %p131 = scmp.eq.s32.totalorder %s23, 0
      %p132 = por %p130, %p131
      %s133 = ssub.s32 %s24, %s36
      %s134 = ssub.s32 %s25, %s32
      %s135 = sor.u32 %s133, %s134
      %p136 = scmp.eq.s32.totalorder %s135, 0
      %s138 = sadd.s32 %s137, 1
      %s139 = scalar_select %p136, %s137, %s138
      %p142 = pneg %p136
      %p143 = scmp.eq.s32.totalorder %s17, 2
      %p144 = por %p142, %p143
      %p145 = scmp.ne.s32.totalorder %s137, %s140
      %p146 = scmp.eq.s32.totalorder %s17, 0
      %p147 = por %p145, %p146
      %p148 = scmp.ne.s32.totalorder %s137, %s140
      %p149 = scmp.eq.s32.totalorder %s22, 2
      %p150 = por %p148, %p149
      %p151 = scmp.ne.s32.totalorder %s140, %s141
      %p152 = scmp.eq.s32.totalorder %s22, 0
      %p153 = por %p151, %p152
      %p154 = scmp.ne.s32.totalorder %s140, %s141
      %p155 = scmp.eq.s32.totalorder %s23, 2
      %p156 = por %p154, %p155
      %p158 = scmp.ne.s32.totalorder %s141, %s157
      %p159 = scmp.eq.s32.totalorder %s23, 0
      %p160 = por %p158, %p159
      %p161 = scmp.le.s32.totalorder 1, %s17
      %p162 = scmp.lt.s32.totalorder %s17, 4
      %p163 = pnand %p161, %p162
      %p164 = pneg %p163
      // Predicated region
      $region9: #{tpu_custom_call.1} parent=5 // pred_check
        _
      $region10: #{tpu_custom_call.1} parent=5 // pred_check_branch
        %166 = sbr.rel (%p163) target = $region12
      $region11: #{tpu_custom_call.1} parent=5 // pred_region
        %s167 = ssub.s32 %s17, 1
        // Predicated region
        $region13: #{tpu_custom_call.1} parent=11 // pred_check
          %p168 = pneg %p83
        $region14: #{tpu_custom_call.1} parent=11 // pred_check_branch
          %170 = sbr.rel (%p168) target = $region16
        $region15: #{tpu_custom_call.1} parent=11 // pred_region
          %p171 = scmp.lt.s32.totalorder %s26, 0
          %s172 = scalar_select %p171, %s26, 0
          %s173 = smul.addr %s172, 2
          %s174 = scalar_lea.vmem %s1, %s173
        $region16: #{tpu_custom_call.1} parent=11 // pred_fallthru
          _
        // Predicated region
        $region17: #{tpu_custom_call.1} parent=11 // pred_check
          %p175 = pneg %p104
        $region18: #{tpu_custom_call.1} parent=11 // pred_check_branch
          %177 = sbr.rel (%p175) target = $region20
        $region19: #{tpu_custom_call.1} parent=11 // pred_region
          %s179 = ssub.s32 3072, 3072
          %180 = vsyncadd [#allocation7], %s179
          %s181 = sshll.u32 [#allocation6], 4
          %s182 = int_to_ptr.vmem [resolvable:$true] %s181
          %187 = dma.hbm_to_vmem [thread:$0]  %s2, 3072, %s182, [#allocation7], 192, 192, 12
        $region20: #{tpu_custom_call.1} parent=11 // pred_fallthru
          _
        // Predicated region
        $region21: #{tpu_custom_call.1} parent=11 // pred_check
          %p188 = pneg %p125
        $region22: #{tpu_custom_call.1} parent=11 // pred_check_branch
          %190 = sbr.rel (%p188) target = $region24
        $region23: #{tpu_custom_call.1} parent=11 // pred_region
          _
        $region24: #{tpu_custom_call.1} parent=11 // pred_fallthru
          _
      $region12: #{tpu_custom_call.1} parent=5 // pred_fallthru
        _
      %p191 = scmp.lt.s32.totalorder %s17, 3
      // Predicated region
      $region25: #{tpu_custom_call.1} parent=5 // pred_check
        %p192 = pneg %p191
      $region26: #{tpu_custom_call.1} parent=5 // pred_check_branch
        %194 = sbr.rel (%p192) target = $region28
      $region27: #{tpu_custom_call.1} parent=5 // pred_region
        // Predicated region
        $region29: #{tpu_custom_call.1} parent=27 // pred_check
          %p195 = pneg %p51
        $region30: #{tpu_custom_call.1} parent=27 // pred_check_branch
          %197 = sbr.rel (%p195) target = $region32
        $region31: #{tpu_custom_call.1} parent=27 // pred_region
          %s198 = sand.u32 %s41, 1
          %s199 = scalar_lea.sflag [#allocation4], %s198
          %s200 = sand.u32 %s41, 1
          %s201 = smul.addr %s200, 24
          %s202 = scalar_lea.vmem [#allocation3], %s201
          %s203 = smul.u32 2, %s24
          %s205 = ssub.s32 384, 384
          %206 = vsyncadd %s199, %s205
          %s207 = smul.addr %s25, 3
          %s208 = smul.addr %s203, 9
          %s209 = sadd.s32 %s207, %s208
          %s210 = smul.addr %s209, 64
          %s211 = scalar_lea.hbm %s0, %s210
          %s212 = sshll.u32 %s202, 4
          %s213 = int_to_ptr.vmem [resolvable:$true] %s212
          %218 = dma.hbm_to_vmem [thread:$0]  %s211, 384, %s213, %s199, 576, 192, 12
        $region32: #{tpu_custom_call.1} parent=27 // pred_fallthru
          _
      $region28: #{tpu_custom_call.1} parent=5 // pred_fallthru
        _
      %p219 = scmp.le.s32.totalorder 1, %s17
      %p220 = scmp.lt.s32.totalorder %s17, 4
      %p221 = pnand %p219, %p220
      %p222 = pneg %p221
      // Predicated region
      $region33: #{tpu_custom_call.1} parent=5 // pred_check
        _
      $region34: #{tpu_custom_call.1} parent=5 // pred_check_branch
        %224 = sbr.rel (%p221) target = $region36
      $region35: #{tpu_custom_call.1} parent=5 // pred_region
        %s225 = ssub.s32 %s17, 1
        %s226 = sand.u32 %s44, 1
        %s227 = scalar_lea.sflag [#allocation4], %s226
        %s228 = sand.u32 %s44, 1
        %s229 = smul.addr %s228, 24
        %s230 = scalar_lea.vmem [#allocation3], %s229
        // Predicated region
        $region37: #{tpu_custom_call.1} parent=35 // pred_check
          %p231 = pneg %p57
        $region38: #{tpu_custom_call.1} parent=35 // pred_check_branch
          %233 = sbr.rel (%p231) target = $region40
        $region39: #{tpu_custom_call.1} parent=35 // pred_region
          %234 = dma.done %s227, 384
        $region40: #{tpu_custom_call.1} parent=35 // pred_fallthru
          _
        // Predicated region
        $region41: #{tpu_custom_call.1} parent=35 // pred_check
          %p235 = pneg %p104
        $region42: #{tpu_custom_call.1} parent=35 // pred_check_branch
          %237 = sbr.rel (%p235) target = $region44
        $region43: #{tpu_custom_call.1} parent=35 // pred_region
          %238 = dma.done [#allocation7], 3072
        $region44: #{tpu_custom_call.1} parent=35 // pred_fallthru
          _
        %s239 = sand.u32 %s44, 1
        %s240 = scalar_lea.sflag [#allocation4], %s239
        %s241 = sand.u32 %s44, 1
        %s242 = smul.addr %s241, 24
        %s243 = scalar_lea.vmem [#allocation3], %s242
        %p244 = pneg %p57
        %p245 = pneg %p54
        %p246 = scmp.lt.s32.totalorder %s26, 0
        %s247 = scalar_select %p246, %s26, 0
        %s248 = smul.addr %s247, 2
        %s249 = scalar_lea.vmem %s1, %s248
        %p250 = pneg %p83
        %p251 = pneg %p80
        %p252 = pneg %p104
        %p253 = pneg %p101
        %p254 = pneg %p125
        %p255 = pneg %p122
        %p256 = pneg %p153
        %p257 = pneg %p150
        %s258 = sand.u32 %s140, 1
        %s259 = scalar_lea.sflag [#allocation5], %s258
        %s260 = sand.u32 %s140, 1
        %s261 = smul.addr %s260, 16
        %s262 = scalar_lea.vmem [#allocation8], %s261
        %s263 = smul.u32 2, %s26
        %p264 = scmp.lt.s32.totalorder %s26, 0
        %s265 = scalar_select %p264, %s26, 0
        %s266 = smul.addr %s265, 2
        %s267 = scalar_lea.vmem %s1, %s266
        %s268 = smul.u32 2, %s26
        %p270 = scmp.eq.s32.totalorder %s27, 0
        // Predicated region
        $region45: #{tpu_custom_call.1} parent=35 // pred_check
          %p271 = pneg %p270
        $region46: #{tpu_custom_call.1} parent=35 // pred_check_branch
          %273 = sbr.rel (%p271) target = $region48
        $region47: #{tpu_custom_call.1} parent=35 // pred_region
          %v274 = vld [vmem:[%s267] sm:$0x3]
          %275 = vst [vmem:[#allocation2] sm:$0x3] %v274
        $region48: #{tpu_custom_call.1} parent=35 // pred_fallthru
          _
        %v276 = vld [vmem:[#allocation2] sm:$0x3]
        %v277 = vld [vmem:[#allocation6] sm:$0xff]
        %v278 = vld [vmem:[#allocation6 + $0x8] sm:$0xf]
        %v279 = vld [vmem:[#allocation6 + $0xc] sm:$0xff]
        %v280 = vld [vmem:[#allocation6 + $0x14] sm:$0xf]
        %v281 = vld [vmem:[#allocation6 + $0x18] sm:$0xff]
        %v282 = vld [vmem:[#allocation6 + $0x20] sm:$0xf]
        %v283 = vld [vmem:[#allocation6 + $0x24] sm:$0xff]
        %v284 = vld [vmem:[#allocation6 + $0x2c] sm:$0xf]
        %v285 = vld [vmem:[#allocation6 + $0x30] sm:$0xff]
        %v286 = vld [vmem:[#allocation6 + $0x38] sm:$0xf]
        %v287 = vld [vmem:[#allocation6 + $0x3c] sm:$0xff]
        %v288 = vld [vmem:[#allocation6 + $0x44] sm:$0xf]
        %v289 = vld [vmem:[#allocation6 + $0x48] sm:$0xff]
        %v290 = vld [vmem:[#allocation6 + $0x50] sm:$0xf]
        %v291 = vld [vmem:[#allocation6 + $0x54] sm:$0xff]
        %v292 = vld [vmem:[#allocation6 + $0x5c] sm:$0xf]
        %v293 = vld [vmem:[#allocation6 + $0x60] sm:$0xff]
        %v294 = vld [vmem:[#allocation6 + $0x68] sm:$0xf]
        %v295 = vld [vmem:[#allocation6 + $0x6c] sm:$0xff]
        %v296 = vld [vmem:[#allocation6 + $0x74] sm:$0xf]
        %v297 = vld [vmem:[#allocation6 + $0x78] sm:$0xff]
        %v298 = vld [vmem:[#allocation6 + $0x80] sm:$0xf]
        %v299 = vld [vmem:[#allocation6 + $0x84] sm:$0xff]
        %v300 = vld [vmem:[#allocation6 + $0x8c] sm:$0xf]
        %v301 = vld [vmem:[#allocation6 + $0x90] sm:$0xff]
        %v302 = vld [vmem:[#allocation6 + $0x98] sm:$0xf]
        %v303 = vld [vmem:[#allocation6 + $0x9c] sm:$0xff]
        %v304 = vld [vmem:[#allocation6 + $0xa4] sm:$0xf]
        %v305 = vld [vmem:[#allocation6 + $0xa8] sm:$0xff]
        %v306 = vld [vmem:[#allocation6 + $0xb0] sm:$0xf]
        %v307 = vld [vmem:[#allocation6 + $0xb4] sm:$0xff]
        %v308 = vld [vmem:[#allocation6 + $0xbc] sm:$0xf]
        %v309 = vld [vmem:[%s3] sm:$0x1]
        %v311 = vlaneseq
        %v312 = vshrl.u32 %v311, 7
        %v313 = vsub.s32 0, %v312
        %v314 = vrot.slane %v309, %v313
        %v316 = vld [vmem:[%s230] sm:$0x11]
        %v317 = vld [vmem:[%s230 + $0x8] sm:$0x1]
        %v318 = vld [vmem:[%s230 + $0xc] sm:$0x11]
        %v319 = vld [vmem:[%s230 + $0x14] sm:$0x1]
        %v320 = vunpack.c.l.bf16 %v316
        %v321 = vunpack.c.h.bf16 %v316
        %v322 = vunpack.c.l.bf16 %v317
        %v323 = vunpack.c.l.bf16 %v318
        %v324 = vunpack.c.h.bf16 %v318
        %v325 = vunpack.c.l.bf16 %v319
        %v326 = vpack.c.bf16 %v276, %v276
        %v359 = vunpack.c.l.b16 %v277
        %v360 = vunpack.c.h.b16 %v277
        %v361 = vunpack.c.l.b16 %v278
        %v362 = vunpack.c.l.b16 %v279
        %v363 = vunpack.c.h.b16 %v279
        %v364 = vunpack.c.l.b16 %v280
        %v365 = vunpack.c.l.b16 %v281
        %v366 = vunpack.c.h.b16 %v281
        %v367 = vunpack.c.l.b16 %v282
        %v368 = vunpack.c.l.b16 %v283
        %v369 = vunpack.c.h.b16 %v283
        %v370 = vunpack.c.l.b16 %v284
        %v371 = vunpack.c.l.b16 %v285
        %v372 = vunpack.c.h.b16 %v285
        %v373 = vunpack.c.l.b16 %v286
        %v374 = vunpack.c.l.b16 %v287
        %v375 = vunpack.c.h.b16 %v287
        %v376 = vunpack.c.l.b16 %v288
        %v377 = vunpack.c.l.b16 %v289
        %v378 = vunpack.c.h.b16 %v289
        %v379 = vunpack.c.l.b16 %v290
        %v380 = vunpack.c.l.b16 %v291
        %v381 = vunpack.c.h.b16 %v291
        %v382 = vunpack.c.l.b16 %v292
        %v383 = vunpack.c.l.b16 %v293
        %v384 = vunpack.c.h.b16 %v293
        %v385 = vunpack.c.l.b16 %v294
        %v386 = vunpack.c.l.b16 %v295
        %v387 = vunpack.c.h.b16 %v295
        %v388 = vunpack.c.l.b16 %v296
        %v389 = vunpack.c.l.b16 %v297
        %v390 = vunpack.c.h.b16 %v297
        %v391 = vunpack.c.l.b16 %v298
        %v392 = vunpack.c.l.b16 %v299
        %v393 = vunpack.c.h.b16 %v299
        %v394 = vunpack.c.l.b16 %v300
        %v395 = vunpack.c.l.b16 %v301
        %v396 = vunpack.c.h.b16 %v301
        %v397 = vunpack.c.l.b16 %v302
        %v398 = vunpack.c.l.b16 %v303
        %v399 = vunpack.c.h.b16 %v303
        %v400 = vunpack.c.l.b16 %v304
        %v401 = vunpack.c.l.b16 %v305
        %v402 = vunpack.c.h.b16 %v305
        %v403 = vunpack.c.l.b16 %v306
        %v404 = vunpack.c.l.b16 %v307
        %v405 = vunpack.c.h.b16 %v307
        %v406 = vunpack.c.l.b16 %v308
        %v407 = vpack.c.b16 %v362, %v359
        %v408 = vpack.c.b16 %v363, %v360
        %v409 = vpack.c.b16 %v364, %v361
        %v410 = vpack.c.b16 %v368, %v365
        %v411 = vpack.c.b16 %v369, %v366
        %v412 = vpack.c.b16 %v370, %v367
        %v413 = vpack.c.b16 %v374, %v371
        %v414 = vpack.c.b16 %v375, %v372
        %v415 = vpack.c.b16 %v376, %v373
        %v416 = vpack.c.b16 %v380, %v377
        %v417 = vpack.c.b16 %v381, %v378
        %v418 = vpack.c.b16 %v382, %v379
        %v419 = vpack.c.b16 %v386, %v383
        %v420 = vpack.c.b16 %v387, %v384
        %v421 = vpack.c.b16 %v388, %v385
        %v422 = vpack.c.b16 %v392, %v389
        %v423 = vpack.c.b16 %v393, %v390
        %v424 = vpack.c.b16 %v394, %v391
        %v425 = vpack.c.b16 %v398, %v395
        %v426 = vpack.c.b16 %v399, %v396
        %v427 = vpack.c.b16 %v400, %v397
        %v428 = vpack.c.b16 %v404, %v401
        %v429 = vpack.c.b16 %v405, %v402
        %v430 = vpack.c.b16 %v406, %v403
        %455 = vmatprep.subr.bf16.mxu0 %v408
        %456 = vmatpush1.bf16.msra.mxu0 %v407
        %457 = vmatprep.subr.bf16.mxu0 %v411
        %458 = vmatpush1.bf16.msra.mxu0 %v410
        %459 = vmatprep.subr.bf16.mxu0 %v414
        %460 = vmatpush1.bf16.msra.mxu0 %v413
        %461 = vmatprep.subr.bf16.mxu0 %v417
        %462 = vmatpush1.bf16.msra.mxu0 %v416
        %463 = vmatprep.subr.bf16.mxu0 %v420
        %464 = vmatpush1.bf16.msra.mxu0 %v419
        %465 = vmatprep.subr.bf16.mxu0 %v423
        %466 = vmatpush1.bf16.msra.mxu0 %v422
        %467 = vmatprep.subr.bf16.mxu0 %v426
        %468 = vmatpush1.bf16.msra.mxu0 %v425
        %469 = vmatprep.subr.bf16.mxu0 %v429
        %470 = vmatpush1.bf16.msra.mxu0 %v428
        %471 = vmatprep.subr.bf16.mxu0 0
        %472 = vmatpush1.bf16.msra.mxu0 0
        %473 = vmatprep.subr.bf16.mxu0 0
        %474 = vmatpush1.bf16.msra.mxu0 0
        %475 = vmatprep.subr.bf16.mxu0 0
        %476 = vmatpush1.bf16.msra.mxu0 0
        %477 = vmatprep.subr.bf16.mxu0 0
        %478 = vmatpush1.bf16.msra.mxu0 0
        %479 = vmatprep.subr.bf16.mxu0 0
        %480 = vmatpush1.bf16.msra.mxu0 0
        %481 = vmatprep.subr.bf16.mxu0 0
        %482 = vmatpush1.bf16.msra.mxu0 0
        %483 = vmatprep.subr.bf16.mxu0 0
        %484 = vmatpush1.bf16.msra.mxu0 0
        %485 = vmatprep.subr.bf16.mxu0 0
        %486 = vmatpush1.bf16.msra.mxu0 0
        %487 = vmatprep.mubr.bf16.mxu0 0
        %488 = vmatmul.mubr.bf16.gmra.mrb[0].mxu0 %v326
        %v489 = vpop.f32.mrb[0].mxu0
        %v490 = vadd.f32 0.0, %v489
        %v491 = vpop.f32.mrb[0].mxu0
        %v492 = vadd.f32 0.0, %v491
        %v493 = vpop.f32.mrb[0].mxu0
        %v494 = vpop.f32.mrb[0].mxu0
        %495 = vdwg.mxu0
        %496 = vmatprep.subr.bf16.mxu0 0
        %497 = vmatpush1.bf16.msra.mxu0 %v409
        %498 = vmatprep.subr.bf16.mxu0 0
        %499 = vmatpush1.bf16.msra.mxu0 %v412
        %500 = vmatprep.subr.bf16.mxu0 0
        %501 = vmatpush1.bf16.msra.mxu0 %v415
        %502 = vmatprep.subr.bf16.mxu0 0
        %503 = vmatpush1.bf16.msra.mxu0 %v418
        %504 = vmatprep.subr.bf16.mxu0 0
        %505 = vmatpush1.bf16.msra.mxu0 %v421
        %506 = vmatprep.subr.bf16.mxu0 0
        %507 = vmatpush1.bf16.msra.mxu0 %v424
        %508 = vmatprep.subr.bf16.mxu0 0
        %509 = vmatpush1.bf16.msra.mxu0 %v427
        %510 = vmatprep.subr.bf16.mxu0 0
        %511 = vmatpush1.bf16.msra.mxu0 %v430
        %512 = vmatprep.subr.bf16.mxu0 0
        %513 = vmatpush1.bf16.msra.mxu0 0
        %514 = vmatprep.subr.bf16.mxu0 0
        %515 = vmatpush1.bf16.msra.mxu0 0
        %516 = vmatprep.subr.bf16.mxu0 0
        %517 = vmatpush1.bf16.msra.mxu0 0
        %518 = vmatprep.subr.bf16.mxu0 0
        %519 = vmatpush1.bf16.msra.mxu0 0
        %520 = vmatprep.subr.bf16.mxu0 0
        %521 = vmatpush1.bf16.msra.mxu0 0
        %522 = vmatprep.subr.bf16.mxu0 0
        %523 = vmatpush1.bf16.msra.mxu0 0
        %524 = vmatprep.subr.bf16.mxu0 0
        %525 = vmatpush1.bf16.msra.mxu0 0
        %526 = vmatprep.subr.bf16.mxu0 0
        %527 = vmatpush1.bf16.msra.mxu0 0
        %528 = vmatprep.mubr.bf16.mxu0 0
        %529 = vmatmul.mubr.bf16.gmra.mrb[0].mxu0 %v326
        %v530 = vpop.f32.mrb[0].mxu0
        %v531 = vadd.f32 0.0, %v530
        %v532 = vpop.f32.mrb[0].mxu0
        %v533 = vpop.f32.mrb[0].mxu0
        %v534 = vpop.f32.mrb[0].mxu0
        %535 = vdwg.mxu0
        %v537 = vrot.slane %v490, 1
        %v540 = vadd.f32 %v320, %v490
        %v541 = vadd.f32 %v323, %v537
        %v542 = vxor.u32 %v540, 2147483648
        %v543 = vxor.u32 %v541, 2147483648
        %v544 = vmul.f32 %v542, 1.442695
        %v545 = vpow.pop %v544
        %v546 = vmul.f32 %v543, 1.442695
        %v547 = vpow.pop %v546
        %v548 = vadd.f32 %v545, 1.0
        %v549 = vadd.f32 %v547, 1.0
        %v550 = vrcp.pop %v548
        %v551 = vmul.f32 1.0, %v550
        %v552 = vrcp.pop %v549
        %v553 = vmul.f32 1.0, %v552
        %v555 = vrot.slane %v492, 1
        %v558 = vadd.f32 %v321, %v492
        %v559 = vadd.f32 %v324, %v555
        %v560 = vxor.u32 %v558, 2147483648
        %v561 = vxor.u32 %v559, 2147483648
        %v562 = vmul.f32 %v560, 1.442695
        %v563 = vpow.pop %v562
        %v564 = vmul.f32 %v561, 1.442695
        %v565 = vpow.pop %v564
        %v566 = vadd.f32 %v563, 1.0
        %v567 = vadd.f32 %v565, 1.0
        %v568 = vrcp.pop %v566
        %v569 = vmul.f32 1.0, %v568
        %v570 = vrcp.pop %v567
        %v571 = vmul.f32 1.0, %v570
        %v572 = vadd.f32 %v531, %v314
        %v574 = vrot.slane %v572, 1
        %v577 = vmul.f32 %v551, %v572
        %v578 = vmul.f32 %v553, %v574
        %v579 = vadd.f32 %v322, %v577
        %v580 = vadd.f32 %v325, %v578
        %v581 = vtanh.pop %v579
        %v582 = vtanh.pop %v580
        %v585 = vrot.slane %v582, 7
        %vm586 = vcmask 1041409
        %v587 = vsel %vm586, %v585, %v581
        %v589 = vsub.f32 %v276, %v587
        %v591 = vrot.slane %v589, 1
        %v594 = vmul.f32 %v569, %v589
        %v595 = vmul.f32 %v571, %v591
        %v596 = vadd.f32 %v581, %v594
        %v597 = vadd.f32 %v582, %v595
        %598 = vst [vmem:[%s262] sm:$0x1] %v596
        %599 = vst [vmem:[%s262 + $0x8] sm:$0x1] %v597
        %v600 = vld [vmem:[%s230] sm:$0x11]
        %v601 = vld [vmem:[%s230 + $0x8] sm:$0x1]
        %v602 = vld [vmem:[%s230 + $0xc] sm:$0x11]
        %v603 = vld [vmem:[%s230 + $0x14] sm:$0x1]
        %v604 = vunpack.c.l.bf16 %v600
        %v605 = vunpack.c.h.bf16 %v600
        %v606 = vunpack.c.l.bf16 %v601
        %v607 = vunpack.c.l.bf16 %v602
        %v608 = vunpack.c.h.bf16 %v602
        %v609 = vunpack.c.l.bf16 %v603
        %v610 = vpack.c.bf16 %v596, %v596
        %v611 = vpack.c.bf16 %v597, %v597
        %v614 = vunpack.c.l.b16 %v610
        %v615 = vunpack.c.l.b16 %v611
        %v616 = vrot.slane %v615, 7
        %v617 = vsel %vm586, %v616, %v614
        %v618 = vpack.c.b16 %v617, %v617
        %620 = vmatprep.subr.bf16.mxu0 %v408
        %621 = vmatpush1.bf16.msra.mxu0 %v407
        %622 = vmatprep.subr.bf16.mxu0 %v411
        %623 = vmatpush1.bf16.msra.mxu0 %v410
        %624 = vmatprep.subr.bf16.mxu0 %v414
        %625 = vmatpush1.bf16.msra.mxu0 %v413
        %626 = vmatprep.subr.bf16.mxu0 %v417
        %627 = vmatpush1.bf16.msra.mxu0 %v416
        %628 = vmatprep.subr.bf16.mxu0 %v420
        %629 = vmatpush1.bf16.msra.mxu0 %v419
        %630 = vmatprep.subr.bf16.mxu0 %v423
        %631 = vmatpush1.bf16.msra.mxu0 %v422
        %632 = vmatprep.subr.bf16.mxu0 %v426
        %633 = vmatpush1.bf16.msra.mxu0 %v425
        %634 = vmatprep.subr.bf16.mxu0 %v429
        %635 = vmatpush1.bf16.msra.mxu0 %v428
        %636 = vmatprep.subr.bf16.mxu0 0
        %637 = vmatpush1.bf16.msra.mxu0 0
        %638 = vmatprep.subr.bf16.mxu0 0
        %639 = vmatpush1.bf16.msra.mxu0 0
        %640 = vmatprep.subr.bf16.mxu0 0
        %641 = vmatpush1.bf16.msra.mxu0 0
        %642 = vmatprep.subr.bf16.mxu0 0
        %643 = vmatpush1.bf16.msra.mxu0 0
        %644 = vmatprep.subr.bf16.mxu0 0
        %645 = vmatpush1.bf16.msra.mxu0 0
        %646 = vmatprep.subr.bf16.mxu0 0
        %647 = vmatpush1.bf16.msra.mxu0 0
        %648 = vmatprep.subr.bf16.mxu0 0
        %649 = vmatpush1.bf16.msra.mxu0 0
        %650 = vmatprep.subr.bf16.mxu0 0
        %651 = vmatpush1.bf16.msra.mxu0 0
        %652 = vmatprep.mubr.bf16.mxu0 0
        %653 = vmatmul.mubr.bf16.gmra.mrb[0].mxu0 %v618
        %v654 = vpop.f32.mrb[0].mxu0
        %v655 = vadd.f32 0.0, %v654
        %v656 = vpop.f32.mrb[0].mxu0
        %v657 = vadd.f32 0.0, %v656
        %v658 = vpop.f32.mrb[0].mxu0
        %v659 = vpop.f32.mrb[0].mxu0
        %660 = vdwg.mxu0
        %661 = vmatprep.subr.bf16.mxu0 0
        %662 = vmatpush1.bf16.msra.mxu0 %v409
        %663 = vmatprep.subr.bf16.mxu0 0
        %664 = vmatpush1.bf16.msra.mxu0 %v412
        %665 = vmatprep.subr.bf16.mxu0 0
        %666 = vmatpush1.bf16.msra.mxu0 %v415
        %667 = vmatprep.subr.bf16.mxu0 0
        %668 = vmatpush1.bf16.msra.mxu0 %v418
        %669 = vmatprep.subr.bf16.mxu0 0
        %670 = vmatpush1.bf16.msra.mxu0 %v421
        %671 = vmatprep.subr.bf16.mxu0 0
        %672 = vmatpush1.bf16.msra.mxu0 %v424
        %673 = vmatprep.subr.bf16.mxu0 0
        %674 = vmatpush1.bf16.msra.mxu0 %v427
        %675 = vmatprep.subr.bf16.mxu0 0
        %676 = vmatpush1.bf16.msra.mxu0 %v430
        %677 = vmatprep.subr.bf16.mxu0 0
        %678 = vmatpush1.bf16.msra.mxu0 0
        %679 = vmatprep.subr.bf16.mxu0 0
        %680 = vmatpush1.bf16.msra.mxu0 0
        %681 = vmatprep.subr.bf16.mxu0 0
        %682 = vmatpush1.bf16.msra.mxu0 0
        %683 = vmatprep.subr.bf16.mxu0 0
        %684 = vmatpush1.bf16.msra.mxu0 0
        %685 = vmatprep.subr.bf16.mxu0 0
        %686 = vmatpush1.bf16.msra.mxu0 0
        %687 = vmatprep.subr.bf16.mxu0 0
        %688 = vmatpush1.bf16.msra.mxu0 0
        %689 = vmatprep.subr.bf16.mxu0 0
        %690 = vmatpush1.bf16.msra.mxu0 0
        %691 = vmatprep.subr.bf16.mxu0 0
        %692 = vmatpush1.bf16.msra.mxu0 0
        %693 = vmatprep.mubr.bf16.mxu0 0
        %694 = vmatmul.mubr.bf16.gmra.mrb[0].mxu0 %v618
        %v695 = vpop.f32.mrb[0].mxu0
        %v696 = vadd.f32 0.0, %v695
        %v697 = vpop.f32.mrb[0].mxu0
        %v698 = vpop.f32.mrb[0].mxu0
        %v699 = vpop.f32.mrb[0].mxu0
        %700 = vdwg.mxu0
        %v702 = vrot.slane %v655, 7
        %v705 = vadd.f32 %v604, %v702
        %v706 = vadd.f32 %v607, %v655
        %v707 = vxor.u32 %v705, 2147483648
        %v708 = vxor.u32 %v706, 2147483648
        %v709 = vmul.f32 %v707, 1.442695
        %v710 = vpow.pop %v709
        %v711 = vmul.f32 %v708, 1.442695
        %v712 = vpow.pop %v711
        %v713 = vadd.f32 %v710, 1.0
        %v714 = vadd.f32 %v712, 1.0
        %v715 = vrcp.pop %v713
        %v716 = vmul.f32 1.0, %v715
        %v717 = vrcp.pop %v714
        %v718 = vmul.f32 1.0, %v717
        %v720 = vrot.slane %v657, 7
        %v723 = vadd.f32 %v605, %v720
        %v724 = vadd.f32 %v608, %v657
        %v725 = vxor.u32 %v723, 2147483648
        %v726 = vxor.u32 %v724, 2147483648
        %v727 = vmul.f32 %v725, 1.442695
        %v728 = vpow.pop %v727
        %v729 = vmul.f32 %v726, 1.442695
        %v730 = vpow.pop %v729
        %v731 = vadd.f32 %v728, 1.0
        %v732 = vadd.f32 %v730, 1.0
        %v733 = vrcp.pop %v731
        %v734 = vmul.f32 1.0, %v733
        %v735 = vrcp.pop %v732
        %v736 = vmul.f32 1.0, %v735
        %v737 = vadd.f32 %v696, %v314
        %v739 = vrot.slane %v737, 7
        %v742 = vmul.f32 %v716, %v739
        %v743 = vmul.f32 %v718, %v737
        %v744 = vadd.f32 %v606, %v742
        %v745 = vadd.f32 %v609, %v743
        %v746 = vtanh.pop %v744
        %v747 = vtanh.pop %v745
        %v750 = vrot.slane %v746, 1
        %v751 = vrot.slane %v747, 1
        %v754 = vsub.f32 %v596, %v750
        %v755 = vsub.f32 %v597, %v751
        %v758 = vrot.slane %v754, 7
        %v759 = vrot.slane %v755, 7
        %v762 = vmul.f32 %v734, %v758
        %v763 = vmul.f32 %v736, %v759
        %v764 = vadd.f32 %v746, %v762
        %v765 = vadd.f32 %v747, %v763
        %766 = vst [vmem:[%s262] sm:$0x2] %v764
        %767 = vst [vmem:[%s262 + $0x8] sm:$0x2] %v765
        %v768 = vld [vmem:[%s230] sm:$0x22]
        %v769 = vld [vmem:[%s230 + $0x8] sm:$0x2]
        %v770 = vld [vmem:[%s230 + $0xc] sm:$0x22]
        %v771 = vld [vmem:[%s230 + $0x14] sm:$0x2]
        %v772 = vunpack.c.l.bf16 %v768
        %v773 = vunpack.c.h.bf16 %v768
        %v774 = vunpack.c.l.bf16 %v769
        %v775 = vunpack.c.l.bf16 %v770
        %v776 = vunpack.c.h.bf16 %v770
        %v777 = vunpack.c.l.bf16 %v771
        %v778 = vpack.c.bf16 %v764, %v764
        %v779 = vpack.c.bf16 %v765, %v765
        %v782 = vunpack.c.l.b16 %v778
        %v783 = vunpack.c.l.b16 %v779
        %v784 = vrot.slane %v782, 1
        %v785 = vsel %vm586, %v783, %v784
        %v786 = vpack.c.b16 %v785, %v785
        %788 = vmatprep.subr.bf16.mxu0 %v408
        %789 = vmatpush1.bf16.msra.mxu0 %v407
        %790 = vmatprep.subr.bf16.mxu0 %v411
        %791 = vmatpush1.bf16.msra.mxu0 %v410
        %792 = vmatprep.subr.bf16.mxu0 %v414
        %793 = vmatpush1.bf16.msra.mxu0 %v413
        %794 = vmatprep.subr.bf16.mxu0 %v417
        %795 = vmatpush1.bf16.msra.mxu0 %v416
        %796 = vmatprep.subr.bf16.mxu0 %v420
        %797 = vmatpush1.bf16.msra.mxu0 %v419
        %798 = vmatprep.subr.bf16.mxu0 %v423
        %799 = vmatpush1.bf16.msra.mxu0 %v422
        %800 = vmatprep.subr.bf16.mxu0 %v426
        %801 = vmatpush1.bf16.msra.mxu0 %v425
        %802 = vmatprep.subr.bf16.mxu0 %v429
        %803 = vmatpush1.bf16.msra.mxu0 %v428
        %804 = vmatprep.subr.bf16.mxu0 0
        %805 = vmatpush1.bf16.msra.mxu0 0
        %806 = vmatprep.subr.bf16.mxu0 0
        %807 = vmatpush1.bf16.msra.mxu0 0
        %808 = vmatprep.subr.bf16.mxu0 0
        %809 = vmatpush1.bf16.msra.mxu0 0
        %810 = vmatprep.subr.bf16.mxu0 0
        %811 = vmatpush1.bf16.msra.mxu0 0
        %812 = vmatprep.subr.bf16.mxu0 0
        %813 = vmatpush1.bf16.msra.mxu0 0
        %814 = vmatprep.subr.bf16.mxu0 0
        %815 = vmatpush1.bf16.msra.mxu0 0
        %816 = vmatprep.subr.bf16.mxu0 0
        %817 = vmatpush1.bf16.msra.mxu0 0
        %818 = vmatprep.subr.bf16.mxu0 0
        %819 = vmatpush1.bf16.msra.mxu0 0
        %820 = vmatprep.mubr.bf16.mxu0 0
        %821 = vmatmul.mubr.bf16.gmra.mrb[0].mxu0 %v786
        %v822 = vpop.f32.mrb[0].mxu0
        %v823 = vadd.f32 0.0, %v822
        %v824 = vpop.f32.mrb[0].mxu0
        %v825 = vadd.f32 0.0, %v824
        %v826 = vpop.f32.mrb[0].mxu0
        %v827 = vpop.f32.mrb[0].mxu0
        %828 = vdwg.mxu0
        %829 = vmatprep.subr.bf16.mxu0 0
        %830 = vmatpush1.bf16.msra.mxu0 %v409
        %831 = vmatprep.subr.bf16.mxu0 0
        %832 = vmatpush1.bf16.msra.mxu0 %v412
        %833 = vmatprep.subr.bf16.mxu0 0
        %834 = vmatpush1.bf16.msra.mxu0 %v415
        %835 = vmatprep.subr.bf16.mxu0 0
        %836 = vmatpush1.bf16.msra.mxu0 %v418
        %837 = vmatprep.subr.bf16.mxu0 0
        %838 = vmatpush1.bf16.msra.mxu0 %v421
        %839 = vmatprep.subr.bf16.mxu0 0
        %840 = vmatpush1.bf16.msra.mxu0 %v424
        %841 = vmatprep.subr.bf16.mxu0 0
        %842 = vmatpush1.bf16.msra.mxu0 %v427
        %843 = vmatprep.subr.bf16.mxu0 0
        %844 = vmatpush1.bf16.msra.mxu0 %v430
        %845 = vmatprep.subr.bf16.mxu0 0
        %846 = vmatpush1.bf16.msra.mxu0 0
        %847 = vmatprep.subr.bf16.mxu0 0
        %848 = vmatpush1.bf16.msra.mxu0 0
        %849 = vmatprep.subr.bf16.mxu0 0
        %850 = vmatpush1.bf16.msra.mxu0 0
        %851 = vmatprep.subr.bf16.mxu0 0
        %852 = vmatpush1.bf16.msra.mxu0 0
        %853 = vmatprep.subr.bf16.mxu0 0
        %854 = vmatpush1.bf16.msra.mxu0 0
        %855 = vmatprep.subr.bf16.mxu0 0
        %856 = vmatpush1.bf16.msra.mxu0 0
        %857 = vmatprep.subr.bf16.mxu0 0
        %858 = vmatpush1.bf16.msra.mxu0 0
        %859 = vmatprep.subr.bf16.mxu0 0
        %860 = vmatpush1.bf16.msra.mxu0 0
        %861 = vmatprep.mubr.bf16.mxu0 0
        %862 = vmatmul.mubr.bf16.gmra.mrb[0].mxu0 %v786
        %v863 = vpop.f32.mrb[0].mxu0
        %v864 = vadd.f32 0.0, %v863
        %v865 = vpop.f32.mrb[0].mxu0
        %v866 = vpop.f32.mrb[0].mxu0
        %v867 = vpop.f32.mrb[0].mxu0
        %868 = vdwg.mxu0
        %v870 = vrot.slane %v823, 6
        %v871 = vrot.slane %v823, 7
        %v874 = vadd.f32 %v772, %v870
        %v875 = vadd.f32 %v775, %v871
        %v876 = vxor.u32 %v874, 2147483648
        %v877 = vxor.u32 %v875, 2147483648
        %v878 = vmul.f32 %v876, 1.442695
        %v879 = vpow.pop %v878
        %v880 = vmul.f32 %v877, 1.442695
        %v881 = vpow.pop %v880
        %v882 = vadd.f32 %v879, 1.0
        %v883 = vadd.f32 %v881, 1.0
        %v884 = vrcp.pop %v882
        %v885 = vmul.f32 1.0, %v884
        %v886 = vrcp.pop %v883
        %v887 = vmul.f32 1.0, %v886
        %v889 = vrot.slane %v825, 6
        %v890 = vrot.slane %v825, 7
        %v893 = vadd.f32 %v773, %v889
        %v894 = vadd.f32 %v776, %v890
        %v895 = vxor.u32 %v893, 2147483648
        %v896 = vxor.u32 %v894, 2147483648
        %v897 = vmul.f32 %v895, 1.442695
        %v898 = vpow.pop %v897
        %v899 = vmul.f32 %v896, 1.442695
        %v900 = vpow.pop %v899
        %v901 = vadd.f32 %v898, 1.0
        %v902 = vadd.f32 %v900, 1.0
        %v903 = vrcp.pop %v901
        %v904 = vmul.f32 1.0, %v903
        %v905 = vrcp.pop %v902
        %v906 = vmul.f32 1.0, %v905
        %v907 = vadd.f32 %v864, %v314
        %v909 = vrot.slane %v907, 6
        %v910 = vrot.slane %v907, 7
        %v913 = vmul.f32 %v885, %v909
        %v914 = vmul.f32 %v887, %v910
        %v915 = vadd.f32 %v774, %v913
        %v916 = vadd.f32 %v777, %v914
        %v917 = vtanh.pop %v915
        %v918 = vtanh.pop %v916
        %v921 = vrot.slane %v917, 1
        %v922 = vrot.slane %v918, 1
        %v925 = vsub.f32 %v764, %v921
        %v926 = vsub.f32 %v765, %v922
        %v929 = vrot.slane %v925, 7
        %v930 = vrot.slane %v926, 7
        %v933 = vmul.f32 %v904, %v929
        %v934 = vmul.f32 %v906, %v930
        %v935 = vadd.f32 %v917, %v933
        %v936 = vadd.f32 %v918, %v934
        %937 = vst [vmem:[%s262] sm:$0x4] %v935
        %938 = vst [vmem:[%s262 + $0x8] sm:$0x4] %v936
        %v939 = vld [vmem:[%s230] sm:$0x22]
        %v940 = vld [vmem:[%s230 + $0x8] sm:$0x2]
        %v941 = vld [vmem:[%s230 + $0xc] sm:$0x22]
        %v942 = vld [vmem:[%s230 + $0x14] sm:$0x2]
        %v943 = vunpack.c.l.bf16 %v939
        %v944 = vunpack.c.h.bf16 %v939
        %v945 = vunpack.c.l.bf16 %v940
        %v946 = vunpack.c.l.bf16 %v941
        %v947 = vunpack.c.h.bf16 %v941
        %v948 = vunpack.c.l.bf16 %v942
        %v949 = vpack.c.bf16 %v935, %v935
        %v950 = vpack.c.bf16 %v936, %v936
        %v953 = vunpack.c.l.b16 %v949
        %v954 = vunpack.c.l.b16 %v950
        %v955 = vrot.slane %v953, 2
        %v956 = vrot.slane %v954, 1
        %v957 = vsel %vm586, %v956, %v955
        %v958 = vpack.c.b16 %v957, %v957
        %960 = vmatprep.subr.bf16.mxu0 %v408
        %961 = vmatpush1.bf16.msra.mxu0 %v407
        %962 = vmatprep.subr.bf16.mxu0 %v411
        %963 = vmatpush1.bf16.msra.mxu0 %v410
        %964 = vmatprep.subr.bf16.mxu0 %v414
        %965 = vmatpush1.bf16.msra.mxu0 %v413
        %966 = vmatprep.subr.bf16.mxu0 %v417
        %967 = vmatpush1.bf16.msra.mxu0 %v416
        %968 = vmatprep.subr.bf16.mxu0 %v420
        %969 = vmatpush1.bf16.msra.mxu0 %v419
        %970 = vmatprep.subr.bf16.mxu0 %v423
        %971 = vmatpush1.bf16.msra.mxu0 %v422
        %972 = vmatprep.subr.bf16.mxu0 %v426
        %973 = vmatpush1.bf16.msra.mxu0 %v425
        %974 = vmatprep.subr.bf16.mxu0 %v429
        %975 = vmatpush1.bf16.msra.mxu0 %v428
        %976 = vmatprep.subr.bf16.mxu0 0
        %977 = vmatpush1.bf16.msra.mxu0 0
        %978 = vmatprep.subr.bf16.mxu0 0
        %979 = vmatpush1.bf16.msra.mxu0 0
        %980 = vmatprep.subr.bf16.mxu0 0
        %981 = vmatpush1.bf16.msra.mxu0 0
        %982 = vmatprep.subr.bf16.mxu0 0
        %983 = vmatpush1.bf16.msra.mxu0 0
        %984 = vmatprep.subr.bf16.mxu0 0
        %985 = vmatpush1.bf16.msra.mxu0 0
        %986 = vmatprep.subr.bf16.mxu0 0
        %987 = vmatpush1.bf16.msra.mxu0 0
        %988 = vmatprep.subr.bf16.mxu0 0
        %989 = vmatpush1.bf16.msra.mxu0 0
        %990 = vmatprep.subr.bf16.mxu0 0
        %991 = vmatpush1.bf16.msra.mxu0 0
        %992 = vmatprep.mubr.bf16.mxu0 0
        %993 = vmatmul.mubr.bf16.gmra.mrb[0].mxu0 %v958
        %v994 = vpop.f32.mrb[0].mxu0
        %v995 = vadd.f32 0.0, %v994
        %v996 = vpop.f32.mrb[0].mxu0
        %v997 = vadd.f32 0.0, %v996
        %v998 = vpop.f32.mrb[0].mxu0
        %v999 = vpop.f32.mrb[0].mxu0
        %1000 = vdwg.mxu0
        %1001 = vmatprep.subr.bf16.mxu0 0
        %1002 = vmatpush1.bf16.msra.mxu0 %v409
        %1003 = vmatprep.subr.bf16.mxu0 0
        %1004 = vmatpush1.bf16.msra.mxu0 %v412
        %1005 = vmatprep.subr.bf16.mxu0 0
        %1006 = vmatpush1.bf16.msra.mxu0 %v415
        %1007 = vmatprep.subr.bf16.mxu0 0
        %1008 = vmatpush1.bf16.msra.mxu0 %v418
        %1009 = vmatprep.subr.bf16.mxu0 0
        %1010 = vmatpush1.bf16.msra.mxu0 %v421
        %1011 = vmatprep.subr.bf16.mxu0 0
        %1012 = vmatpush1.bf16.msra.mxu0 %v424
        %1013 = vmatprep.subr.bf16.mxu0 0
        %1014 = vmatpush1.bf16.msra.mxu0 %v427
        %1015 = vmatprep.subr.bf16.mxu0 0
        %1016 = vmatpush1.bf16.msra.mxu0 %v430
        %1017 = vmatprep.subr.bf16.mxu0 0
        %1018 = vmatpush1.bf16.msra.mxu0 0
        %1019 = vmatprep.subr.bf16.mxu0 0
        %1020 = vmatpush1.bf16.msra.mxu0 0
        %1021 = vmatprep.subr.bf16.mxu0 0
        %1022 = vmatpush1.bf16.msra.mxu0 0
        %1023 = vmatprep.subr.bf16.mxu0 0
        %1024 = vmatpush1.bf16.msra.mxu0 0
        %1025 = vmatprep.subr.bf16.mxu0 0
        %1026 = vmatpush1.bf16.msra.mxu0 0
        %1027 = vmatprep.subr.bf16.mxu0 0
        %1028 = vmatpush1.bf16.msra.mxu0 0
        %1029 = vmatprep.subr.bf16.mxu0 0
        %1030 = vmatpush1.bf16.msra.mxu0 0
        %1031 = vmatprep.subr.bf16.mxu0 0
        %1032 = vmatpush1.bf16.msra.mxu0 0
        %1033 = vmatprep.mubr.bf16.mxu0 0
        %1034 = vmatmul.mubr.bf16.gmra.mrb[0].mxu0 %v958
        %v1035 = vpop.f32.mrb[0].mxu0
        %v1036 = vadd.f32 0.0, %v1035
        %v1037 = vpop.f32.mrb[0].mxu0
        %v1038 = vpop.f32.mrb[0].mxu0
        %v1039 = vpop.f32.mrb[0].mxu0
        %1040 = vdwg.mxu0
        %v1042 = vrot.slane %v995, 5
        %v1043 = vrot.slane %v995, 6
        %v1046 = vadd.f32 %v943, %v1042
        %v1047 = vadd.f32 %v946, %v1043
        %v1048 = vxor.u32 %v1046, 2147483648
        %v1049 = vxor.u32 %v1047, 2147483648
        %v1050 = vmul.f32 %v1048, 1.442695
        %v1051 = vpow.pop %v1050
        %v1052 = vmul.f32 %v1049, 1.442695
        %v1053 = vpow.pop %v1052
        %v1054 = vadd.f32 %v1051, 1.0
        %v1055 = vadd.f32 %v1053, 1.0
        %v1056 = vrcp.pop %v1054
        %v1057 = vmul.f32 1.0, %v1056
        %v1058 = vrcp.pop %v1055
        %v1059 = vmul.f32 1.0, %v1058
        %v1061 = vrot.slane %v997, 5
        %v1062 = vrot.slane %v997, 6
        %v1065 = vadd.f32 %v944, %v1061
        %v1066 = vadd.f32 %v947, %v1062
        %v1067 = vxor.u32 %v1065, 2147483648
        %v1068 = vxor.u32 %v1066, 2147483648
        %v1069 = vmul.f32 %v1067, 1.442695
        %v1070 = vpow.pop %v1069
        %v1071 = vmul.f32 %v1068, 1.442695
        %v1072 = vpow.pop %v1071
        %v1073 = vadd.f32 %v1070, 1.0
        %v1074 = vadd.f32 %v1072, 1.0
        %v1075 = vrcp.pop %v1073
        %v1076 = vmul.f32 1.0, %v1075
        %v1077 = vrcp.pop %v1074
        %v1078 = vmul.f32 1.0, %v1077
        %v1079 = vadd.f32 %v1036, %v314
        %v1081 = vrot.slane %v1079, 5
        %v1082 = vrot.slane %v1079, 6
        %v1085 = vmul.f32 %v1057, %v1081
        %v1086 = vmul.f32 %v1059, %v1082
        %v1087 = vadd.f32 %v945, %v1085
        %v1088 = vadd.f32 %v948, %v1086
        %v1089 = vtanh.pop %v1087
        %v1090 = vtanh.pop %v1088
        %v1093 = vrot.slane %v1089, 1
        %v1094 = vrot.slane %v1090, 1
        %v1097 = vsub.f32 %v935, %v1093
        %v1098 = vsub.f32 %v936, %v1094
        %v1101 = vrot.slane %v1097, 7
        %v1102 = vrot.slane %v1098, 7
        %v1105 = vmul.f32 %v1076, %v1101
        %v1106 = vmul.f32 %v1078, %v1102
        %v1107 = vadd.f32 %v1089, %v1105
        %v1108 = vadd.f32 %v1090, %v1106
        %1109 = vst [vmem:[%s262] sm:$0x8] %v1107
        %1110 = vst [vmem:[%s262 + $0x8] sm:$0x8] %v1108
        %v1111 = vld [vmem:[%s230] sm:$0x44]
        %v1112 = vld [vmem:[%s230 + $0x8] sm:$0x4]
        %v1113 = vld [vmem:[%s230 + $0xc] sm:$0x44]
        %v1114 = vld [vmem:[%s230 + $0x14] sm:$0x4]
        %v1115 = vunpack.c.l.bf16 %v1111
        %v1116 = vunpack.c.h.bf16 %v1111
        %v1117 = vunpack.c.l.bf16 %v1112
        %v1118 = vunpack.c.l.bf16 %v1113
        %v1119 = vunpack.c.h.bf16 %v1113
        %v1120 = vunpack.c.l.bf16 %v1114
        %v1121 = vpack.c.bf16 %v1107, %v1107
        %v1122 = vpack.c.bf16 %v1108, %v1108
        %v1125 = vunpack.c.l.b16 %v1121
        %v1126 = vunpack.c.l.b16 %v1122
        %v1127 = vrot.slane %v1125, 3
        %v1128 = vrot.slane %v1126, 2
        %v1129 = vsel %vm586, %v1128, %v1127
        %v1130 = vpack.c.b16 %v1129, %v1129
        %1132 = vmatprep.subr.bf16.mxu0 %v408
        %1133 = vmatpush1.bf16.msra.mxu0 %v407
        %1134 = vmatprep.subr.bf16.mxu0 %v411
        %1135 = vmatpush1.bf16.msra.mxu0 %v410
        %1136 = vmatprep.subr.bf16.mxu0 %v414
        %1137 = vmatpush1.bf16.msra.mxu0 %v413
        %1138 = vmatprep.subr.bf16.mxu0 %v417
        %1139 = vmatpush1.bf16.msra.mxu0 %v416
        %1140 = vmatprep.subr.bf16.mxu0 %v420
        %1141 = vmatpush1.bf16.msra.mxu0 %v419
        %1142 = vmatprep.subr.bf16.mxu0 %v423
        %1143 = vmatpush1.bf16.msra.mxu0 %v422
        %1144 = vmatprep.subr.bf16.mxu0 %v426
        %1145 = vmatpush1.bf16.msra.mxu0 %v425
        %1146 = vmatprep.subr.bf16.mxu0 %v429
        %1147 = vmatpush1.bf16.msra.mxu0 %v428
        %1148 = vmatprep.subr.bf16.mxu0 0
        %1149 = vmatpush1.bf16.msra.mxu0 0
        %1150 = vmatprep.subr.bf16.mxu0 0
        %1151 = vmatpush1.bf16.msra.mxu0 0
        %1152 = vmatprep.subr.bf16.mxu0 0
        %1153 = vmatpush1.bf16.msra.mxu0 0
        %1154 = vmatprep.subr.bf16.mxu0 0
        %1155 = vmatpush1.bf16.msra.mxu0 0
        %1156 = vmatprep.subr.bf16.mxu0 0
        %1157 = vmatpush1.bf16.msra.mxu0 0
        %1158 = vmatprep.subr.bf16.mxu0 0
        %1159 = vmatpush1.bf16.msra.mxu0 0
        %1160 = vmatprep.subr.bf16.mxu0 0
        %1161 = vmatpush1.bf16.msra.mxu0 0
        %1162 = vmatprep.subr.bf16.mxu0 0
        %1163 = vmatpush1.bf16.msra.mxu0 0
        %1164 = vmatprep.mubr.bf16.mxu0 0
        %1165 = vmatmul.mubr.bf16.gmra.mrb[0].mxu0 %v1130
        %v1166 = vpop.f32.mrb[0].mxu0
        %v1167 = vadd.f32 0.0, %v1166
        %v1168 = vpop.f32.mrb[0].mxu0
        %v1169 = vadd.f32 0.0, %v1168
        %v1170 = vpop.f32.mrb[0].mxu0
        %v1171 = vpop.f32.mrb[0].mxu0
        %1172 = vdwg.mxu0
        %1173 = vmatprep.subr.bf16.mxu0 0
        %1174 = vmatpush1.bf16.msra.mxu0 %v409
        %1175 = vmatprep.subr.bf16.mxu0 0
        %1176 = vmatpush1.bf16.msra.mxu0 %v412
        %1177 = vmatprep.subr.bf16.mxu0 0
        %1178 = vmatpush1.bf16.msra.mxu0 %v415
        %1179 = vmatprep.subr.bf16.mxu0 0
        %1180 = vmatpush1.bf16.msra.mxu0 %v418
        %1181 = vmatprep.subr.bf16.mxu0 0
        %1182 = vmatpush1.bf16.msra.mxu0 %v421
        %1183 = vmatprep.subr.bf16.mxu0 0
        %1184 = vmatpush1.bf16.msra.mxu0 %v424
        %1185 = vmatprep.subr.bf16.mxu0 0
        %1186 = vmatpush1.bf16.msra.mxu0 %v427
        %1187 = vmatprep.subr.bf16.mxu0 0
        %1188 = vmatpush1.bf16.msra.mxu0 %v430
        %1189 = vmatprep.subr.bf16.mxu0 0
        %1190 = vmatpush1.bf16.msra.mxu0 0
        %1191 = vmatprep.subr.bf16.mxu0 0
        %1192 = vmatpush1.bf16.msra.mxu0 0
        %1193 = vmatprep.subr.bf16.mxu0 0
        %1194 = vmatpush1.bf16.msra.mxu0 0
        %1195 = vmatprep.subr.bf16.mxu0 0
        %1196 = vmatpush1.bf16.msra.mxu0 0
        %1197 = vmatprep.subr.bf16.mxu0 0
        %1198 = vmatpush1.bf16.msra.mxu0 0
        %1199 = vmatprep.subr.bf16.mxu0 0
        %1200 = vmatpush1.bf16.msra.mxu0 0
        %1201 = vmatprep.subr.bf16.mxu0 0
        %1202 = vmatpush1.bf16.msra.mxu0 0
        %1203 = vmatprep.subr.bf16.mxu0 0
        %1204 = vmatpush1.bf16.msra.mxu0 0
        %1205 = vmatprep.mubr.bf16.mxu0 0
        %1206 = vmatmul.mubr.bf16.gmra.mrb[0].mxu0 %v1130
        %v1207 = vpop.f32.mrb[0].mxu0
        %v1208 = vadd.f32 0.0, %v1207
        %v1209 = vpop.f32.mrb[0].mxu0
        %v1210 = vpop.f32.mrb[0].mxu0
        %v1211 = vpop.f32.mrb[0].mxu0
        %1212 = vdwg.mxu0
        %v1214 = vrot.slane %v1167, 4
        %v1215 = vrot.slane %v1167, 5
        %v1218 = vadd.f32 %v1115, %v1214
        %v1219 = vadd.f32 %v1118, %v1215
        %v1220 = vxor.u32 %v1218, 2147483648
        %v1221 = vxor.u32 %v1219, 2147483648
        %v1222 = vmul.f32 %v1220, 1.442695
        %v1223 = vpow.pop %v1222
        %v1224 = vmul.f32 %v1221, 1.442695
        %v1225 = vpow.pop %v1224
        %v1226 = vadd.f32 %v1223, 1.0
        %v1227 = vadd.f32 %v1225, 1.0
        %v1228 = vrcp.pop %v1226
        %v1229 = vmul.f32 1.0, %v1228
        %v1230 = vrcp.pop %v1227
        %v1231 = vmul.f32 1.0, %v1230
        %v1233 = vrot.slane %v1169, 4
        %v1234 = vrot.slane %v1169, 5
        %v1237 = vadd.f32 %v1116, %v1233
        %v1238 = vadd.f32 %v1119, %v1234
        %v1239 = vxor.u32 %v1237, 2147483648
        %v1240 = vxor.u32 %v1238, 2147483648
        %v1241 = vmul.f32 %v1239, 1.442695
        %v1242 = vpow.pop %v1241
        %v1243 = vmul.f32 %v1240, 1.442695
        %v1244 = vpow.pop %v1243
        %v1245 = vadd.f32 %v1242, 1.0
        %v1246 = vadd.f32 %v1244, 1.0
        %v1247 = vrcp.pop %v1245
        %v1248 = vmul.f32 1.0, %v1247
        %v1249 = vrcp.pop %v1246
        %v1250 = vmul.f32 1.0, %v1249
        %v1251 = vadd.f32 %v1208, %v314
        %v1253 = vrot.slane %v1251, 4
        %v1254 = vrot.slane %v1251, 5
        %v1257 = vmul.f32 %v1229, %v1253
        %v1258 = vmul.f32 %v1231, %v1254
        %v1259 = vadd.f32 %v1117, %v1257
        %v1260 = vadd.f32 %v1120, %v1258
        %v1261 = vtanh.pop %v1259
        %v1262 = vtanh.pop %v1260
        %v1265 = vrot.slane %v1261, 1
        %v1266 = vrot.slane %v1262, 1
        %v1269 = vsub.f32 %v1107, %v1265
        %v1270 = vsub.f32 %v1108, %v1266
        %v1273 = vrot.slane %v1269, 7
        %v1274 = vrot.slane %v1270, 7
        %v1277 = vmul.f32 %v1248, %v1273
        %v1278 = vmul.f32 %v1250, %v1274
        %v1279 = vadd.f32 %v1261, %v1277
        %v1280 = vadd.f32 %v1262, %v1278
        %1281 = vst [vmem:[%s262] sm:$0x10] %v1279
        %1282 = vst [vmem:[%s262 + $0x8] sm:$0x10] %v1280
        %v1283 = vld [vmem:[%s230] sm:$0x44]
        %v1284 = vld [vmem:[%s230 + $0x8] sm:$0x4]
        %v1285 = vld [vmem:[%s230 + $0xc] sm:$0x44]
        %v1286 = vld [vmem:[%s230 + $0x14] sm:$0x4]
        %v1287 = vunpack.c.l.bf16 %v1283
        %v1288 = vunpack.c.h.bf16 %v1283
        %v1289 = vunpack.c.l.bf16 %v1284
        %v1290 = vunpack.c.l.bf16 %v1285
        %v1291 = vunpack.c.h.bf16 %v1285
        %v1292 = vunpack.c.l.bf16 %v1286
        %v1293 = vpack.c.bf16 %v1279, %v1279
        %v1294 = vpack.c.bf16 %v1280, %v1280
        %v1297 = vunpack.c.l.b16 %v1293
        %v1298 = vunpack.c.l.b16 %v1294
        %v1299 = vrot.slane %v1297, 4
        %v1300 = vrot.slane %v1298, 3
        %v1301 = vsel %vm586, %v1300, %v1299
        %v1302 = vpack.c.b16 %v1301, %v1301
        %1304 = vmatprep.subr.bf16.mxu0 %v408
        %1305 = vmatpush1.bf16.msra.mxu0 %v407
        %1306 = vmatprep.subr.bf16.mxu0 %v411
        %1307 = vmatpush1.bf16.msra.mxu0 %v410
        %1308 = vmatprep.subr.bf16.mxu0 %v414
        %1309 = vmatpush1.bf16.msra.mxu0 %v413
        %1310 = vmatprep.subr.bf16.mxu0 %v417
        %1311 = vmatpush1.bf16.msra.mxu0 %v416
        %1312 = vmatprep.subr.bf16.mxu0 %v420
        %1313 = vmatpush1.bf16.msra.mxu0 %v419
        %1314 = vmatprep.subr.bf16.mxu0 %v423
        %1315 = vmatpush1.bf16.msra.mxu0 %v422
        %1316 = vmatprep.subr.bf16.mxu0 %v426
        %1317 = vmatpush1.bf16.msra.mxu0 %v425
        %1318 = vmatprep.subr.bf16.mxu0 %v429
        %1319 = vmatpush1.bf16.msra.mxu0 %v428
        %1320 = vmatprep.subr.bf16.mxu0 0
        %1321 = vmatpush1.bf16.msra.mxu0 0
        %1322 = vmatprep.subr.bf16.mxu0 0
        %1323 = vmatpush1.bf16.msra.mxu0 0
        %1324 = vmatprep.subr.bf16.mxu0 0
        %1325 = vmatpush1.bf16.msra.mxu0 0
        %1326 = vmatprep.subr.bf16.mxu0 0
        %1327 = vmatpush1.bf16.msra.mxu0 0
        %1328 = vmatprep.subr.bf16.mxu0 0
        %1329 = vmatpush1.bf16.msra.mxu0 0
        %1330 = vmatprep.subr.bf16.mxu0 0
        %1331 = vmatpush1.bf16.msra.mxu0 0
        %1332 = vmatprep.subr.bf16.mxu0 0
        %1333 = vmatpush1.bf16.msra.mxu0 0
        %1334 = vmatprep.subr.bf16.mxu0 0
        %1335 = vmatpush1.bf16.msra.mxu0 0
        %1336 = vmatprep.mubr.bf16.mxu0 0
        %1337 = vmatmul.mubr.bf16.gmra.mrb[0].mxu0 %v1302
        %v1338 = vpop.f32.mrb[0].mxu0
        %v1339 = vadd.f32 0.0, %v1338
        %v1340 = vpop.f32.mrb[0].mxu0
        %v1341 = vadd.f32 0.0, %v1340
        %v1342 = vpop.f32.mrb[0].mxu0
        %v1343 = vpop.f32.mrb[0].mxu0
        %1344 = vdwg.mxu0
        %1345 = vmatprep.subr.bf16.mxu0 0
        %1346 = vmatpush1.bf16.msra.mxu0 %v409
        %1347 = vmatprep.subr.bf16.mxu0 0
        %1348 = vmatpush1.bf16.msra.mxu0 %v412
        %1349 = vmatprep.subr.bf16.mxu0 0
        %1350 = vmatpush1.bf16.msra.mxu0 %v415
        %1351 = vmatprep.subr.bf16.mxu0 0
        %1352 = vmatpush1.bf16.msra.mxu0 %v418
        %1353 = vmatprep.subr.bf16.mxu0 0
        %1354 = vmatpush1.bf16.msra.mxu0 %v421
        %1355 = vmatprep.subr.bf16.mxu0 0
        %1356 = vmatpush1.bf16.msra.mxu0 %v424
        %1357 = vmatprep.subr.bf16.mxu0 0
        %1358 = vmatpush1.bf16.msra.mxu0 %v427
        %1359 = vmatprep.subr.bf16.mxu0 0
        %1360 = vmatpush1.bf16.msra.mxu0 %v430
        %1361 = vmatprep.subr.bf16.mxu0 0
        %1362 = vmatpush1.bf16.msra.mxu0 0
        %1363 = vmatprep.subr.bf16.mxu0 0
        %1364 = vmatpush1.bf16.msra.mxu0 0
        %1365 = vmatprep.subr.bf16.mxu0 0
        %1366 = vmatpush1.bf16.msra.mxu0 0
        %1367 = vmatprep.subr.bf16.mxu0 0
        %1368 = vmatpush1.bf16.msra.mxu0 0
        %1369 = vmatprep.subr.bf16.mxu0 0
        %1370 = vmatpush1.bf16.msra.mxu0 0
        %1371 = vmatprep.subr.bf16.mxu0 0
        %1372 = vmatpush1.bf16.msra.mxu0 0
        %1373 = vmatprep.subr.bf16.mxu0 0
        %1374 = vmatpush1.bf16.msra.mxu0 0
        %1375 = vmatprep.subr.bf16.mxu0 0
        %1376 = vmatpush1.bf16.msra.mxu0 0
        %1377 = vmatprep.mubr.bf16.mxu0 0
        %1378 = vmatmul.mubr.bf16.gmra.mrb[0].mxu0 %v1302
        %v1379 = vpop.f32.mrb[0].mxu0
        %v1380 = vadd.f32 0.0, %v1379
        %v1381 = vpop.f32.mrb[0].mxu0
        %v1382 = vpop.f32.mrb[0].mxu0
        %v1383 = vpop.f32.mrb[0].mxu0
        %1384 = vdwg.mxu0
        %v1386 = vrot.slane %v1339, 3
        %v1387 = vrot.slane %v1339, 4
        %v1390 = vadd.f32 %v1287, %v1386
        %v1391 = vadd.f32 %v1290, %v1387
        %v1392 = vxor.u32 %v1390, 2147483648
        %v1393 = vxor.u32 %v1391, 2147483648
        %v1394 = vmul.f32 %v1392, 1.442695
        %v1395 = vpow.pop %v1394
        %v1396 = vmul.f32 %v1393, 1.442695
        %v1397 = vpow.pop %v1396
        %v1398 = vadd.f32 %v1395, 1.0
        %v1399 = vadd.f32 %v1397, 1.0
        %v1400 = vrcp.pop %v1398
        %v1401 = vmul.f32 1.0, %v1400
        %v1402 = vrcp.pop %v1399
        %v1403 = vmul.f32 1.0, %v1402
        %v1405 = vrot.slane %v1341, 3
        %v1406 = vrot.slane %v1341, 4
        %v1409 = vadd.f32 %v1288, %v1405
        %v1410 = vadd.f32 %v1291, %v1406
        %v1411 = vxor.u32 %v1409, 2147483648
        %v1412 = vxor.u32 %v1410, 2147483648
        %v1413 = vmul.f32 %v1411, 1.442695
        %v1414 = vpow.pop %v1413
        %v1415 = vmul.f32 %v1412, 1.442695
        %v1416 = vpow.pop %v1415
        %v1417 = vadd.f32 %v1414, 1.0
        %v1418 = vadd.f32 %v1416, 1.0
        %v1419 = vrcp.pop %v1417
        %v1420 = vmul.f32 1.0, %v1419
        %v1421 = vrcp.pop %v1418
        %v1422 = vmul.f32 1.0, %v1421
        %v1423 = vadd.f32 %v1380, %v314
        %v1425 = vrot.slane %v1423, 3
        %v1426 = vrot.slane %v1423, 4
        %v1429 = vmul.f32 %v1401, %v1425
        %v1430 = vmul.f32 %v1403, %v1426
        %v1431 = vadd.f32 %v1289, %v1429
        %v1432 = vadd.f32 %v1292, %v1430
        %v1433 = vtanh.pop %v1431
        %v1434 = vtanh.pop %v1432
        %v1437 = vrot.slane %v1433, 1
        %v1438 = vrot.slane %v1434, 1
        %v1441 = vsub.f32 %v1279, %v1437
        %v1442 = vsub.f32 %v1280, %v1438
        %v1445 = vrot.slane %v1441, 7
        %v1446 = vrot.slane %v1442, 7
        %v1449 = vmul.f32 %v1420, %v1445
        %v1450 = vmul.f32 %v1422, %v1446
        %v1451 = vadd.f32 %v1433, %v1449
        %v1452 = vadd.f32 %v1434, %v1450
        %1453 = vst [vmem:[%s262] sm:$0x20] %v1451
        %1454 = vst [vmem:[%s262 + $0x8] sm:$0x20] %v1452
        %v1455 = vld [vmem:[%s230] sm:$0x88]
        %v1456 = vld [vmem:[%s230 + $0x8] sm:$0x8]
        %v1457 = vld [vmem:[%s230 + $0xc] sm:$0x88]
        %v1458 = vld [vmem:[%s230 + $0x14] sm:$0x8]
        %v1459 = vunpack.c.l.bf16 %v1455
        %v1460 = vunpack.c.h.bf16 %v1455
        %v1461 = vunpack.c.l.bf16 %v1456
        %v1462 = vunpack.c.l.bf16 %v1457
        %v1463 = vunpack.c.h.bf16 %v1457
        %v1464 = vunpack.c.l.bf16 %v1458
        %v1465 = vpack.c.bf16 %v1451, %v1451
        %v1466 = vpack.c.bf16 %v1452, %v1452
        %v1469 = vunpack.c.l.b16 %v1465
        %v1470 = vunpack.c.l.b16 %v1466
        %v1471 = vrot.slane %v1469, 5
        %v1472 = vrot.slane %v1470, 4
        %v1473 = vsel %vm586, %v1472, %v1471
        %v1474 = vpack.c.b16 %v1473, %v1473
        %1476 = vmatprep.subr.bf16.mxu0 %v408
        %1477 = vmatpush1.bf16.msra.mxu0 %v407
        %1478 = vmatprep.subr.bf16.mxu0 %v411
        %1479 = vmatpush1.bf16.msra.mxu0 %v410
        %1480 = vmatprep.subr.bf16.mxu0 %v414
        %1481 = vmatpush1.bf16.msra.mxu0 %v413
        %1482 = vmatprep.subr.bf16.mxu0 %v417
        %1483 = vmatpush1.bf16.msra.mxu0 %v416
        %1484 = vmatprep.subr.bf16.mxu0 %v420
        %1485 = vmatpush1.bf16.msra.mxu0 %v419
        %1486 = vmatprep.subr.bf16.mxu0 %v423
        %1487 = vmatpush1.bf16.msra.mxu0 %v422
        %1488 = vmatprep.subr.bf16.mxu0 %v426
        %1489 = vmatpush1.bf16.msra.mxu0 %v425
        %1490 = vmatprep.subr.bf16.mxu0 %v429
        %1491 = vmatpush1.bf16.msra.mxu0 %v428
        %1492 = vmatprep.subr.bf16.mxu0 0
        %1493 = vmatpush1.bf16.msra.mxu0 0
        %1494 = vmatprep.subr.bf16.mxu0 0
        %1495 = vmatpush1.bf16.msra.mxu0 0
        %1496 = vmatprep.subr.bf16.mxu0 0
        %1497 = vmatpush1.bf16.msra.mxu0 0
        %1498 = vmatprep.subr.bf16.mxu0 0
        %1499 = vmatpush1.bf16.msra.mxu0 0
        %1500 = vmatprep.subr.bf16.mxu0 0
        %1501 = vmatpush1.bf16.msra.mxu0 0
        %1502 = vmatprep.subr.bf16.mxu0 0
        %1503 = vmatpush1.bf16.msra.mxu0 0
        %1504 = vmatprep.subr.bf16.mxu0 0
        %1505 = vmatpush1.bf16.msra.mxu0 0
        %1506 = vmatprep.subr.bf16.mxu0 0
        %1507 = vmatpush1.bf16.msra.mxu0 0
        %1508 = vmatprep.mubr.bf16.mxu0 0
        %1509 = vmatmul.mubr.bf16.gmra.mrb[0].mxu0 %v1474
        %v1510 = vpop.f32.mrb[0].mxu0
        %v1511 = vadd.f32 0.0, %v1510
        %v1512 = vpop.f32.mrb[0].mxu0
        %v1513 = vadd.f32 0.0, %v1512
        %v1514 = vpop.f32.mrb[0].mxu0
        %v1515 = vpop.f32.mrb[0].mxu0
        %1516 = vdwg.mxu0
        %1517 = vmatprep.subr.bf16.mxu0 0
        %1518 = vmatpush1.bf16.msra.mxu0 %v409
        %1519 = vmatprep.subr.bf16.mxu0 0
        %1520 = vmatpush1.bf16.msra.mxu0 %v412
        %1521 = vmatprep.subr.bf16.mxu0 0
        %1522 = vmatpush1.bf16.msra.mxu0 %v415
        %1523 = vmatprep.subr.bf16.mxu0 0
        %1524 = vmatpush1.bf16.msra.mxu0 %v418
        %1525 = vmatprep.subr.bf16.mxu0 0
        %1526 = vmatpush1.bf16.msra.mxu0 %v421
        %1527 = vmatprep.subr.bf16.mxu0 0
        %1528 = vmatpush1.bf16.msra.mxu0 %v424
        %1529 = vmatprep.subr.bf16.mxu0 0
        %1530 = vmatpush1.bf16.msra.mxu0 %v427
        %1531 = vmatprep.subr.bf16.mxu0 0
        %1532 = vmatpush1.bf16.msra.mxu0 %v430
        %1533 = vmatprep.subr.bf16.mxu0 0
        %1534 = vmatpush1.bf16.msra.mxu0 0
        %1535 = vmatprep.subr.bf16.mxu0 0
        %1536 = vmatpush1.bf16.msra.mxu0 0
        %1537 = vmatprep.subr.bf16.mxu0 0
        %1538 = vmatpush1.bf16.msra.mxu0 0
        %1539 = vmatprep.subr.bf16.mxu0 0
        %1540 = vmatpush1.bf16.msra.mxu0 0
        %1541 = vmatprep.subr.bf16.mxu0 0
        %1542 = vmatpush1.bf16.msra.mxu0 0
        %1543 = vmatprep.subr.bf16.mxu0 0
        %1544 = vmatpush1.bf16.msra.mxu0 0
        %1545 = vmatprep.subr.bf16.mxu0 0
        %1546 = vmatpush1.bf16.msra.mxu0 0
        %1547 = vmatprep.subr.bf16.mxu0 0
        %1548 = vmatpush1.bf16.msra.mxu0 0
        %1549 = vmatprep.mubr.bf16.mxu0 0
        %1550 = vmatmul.mubr.bf16.gmra.mrb[0].mxu0 %v1474
        %v1551 = vpop.f32.mrb[0].mxu0
        %v1552 = vadd.f32 0.0, %v1551
        %v1553 = vpop.f32.mrb[0].mxu0
        %v1554 = vpop.f32.mrb[0].mxu0
        %v1555 = vpop.f32.mrb[0].mxu0
        %1556 = vdwg.mxu0
        %v1558 = vrot.slane %v1511, 2
        %v1559 = vrot.slane %v1511, 3
        %v1562 = vadd.f32 %v1459, %v1558
        %v1563 = vadd.f32 %v1462, %v1559
        %v1564 = vxor.u32 %v1562, 2147483648
        %v1565 = vxor.u32 %v1563, 2147483648
        %v1566 = vmul.f32 %v1564, 1.442695
        %v1567 = vpow.pop %v1566
        %v1568 = vmul.f32 %v1565, 1.442695
        %v1569 = vpow.pop %v1568
        %v1570 = vadd.f32 %v1567, 1.0
        %v1571 = vadd.f32 %v1569, 1.0
        %v1572 = vrcp.pop %v1570
        %v1573 = vmul.f32 1.0, %v1572
        %v1574 = vrcp.pop %v1571
        %v1575 = vmul.f32 1.0, %v1574
        %v1577 = vrot.slane %v1513, 2
        %v1578 = vrot.slane %v1513, 3
        %v1581 = vadd.f32 %v1460, %v1577
        %v1582 = vadd.f32 %v1463, %v1578
        %v1583 = vxor.u32 %v1581, 2147483648
        %v1584 = vxor.u32 %v1582, 2147483648
        %v1585 = vmul.f32 %v1583, 1.442695
        %v1586 = vpow.pop %v1585
        %v1587 = vmul.f32 %v1584, 1.442695
        %v1588 = vpow.pop %v1587
        %v1589 = vadd.f32 %v1586, 1.0
        %v1590 = vadd.f32 %v1588, 1.0
        %v1591 = vrcp.pop %v1589
        %v1592 = vmul.f32 1.0, %v1591
        %v1593 = vrcp.pop %v1590
        %v1594 = vmul.f32 1.0, %v1593
        %v1595 = vadd.f32 %v1552, %v314
        %v1597 = vrot.slane %v1595, 2
        %v1598 = vrot.slane %v1595, 3
        %v1601 = vmul.f32 %v1573, %v1597
        %v1602 = vmul.f32 %v1575, %v1598
        %v1603 = vadd.f32 %v1461, %v1601
        %v1604 = vadd.f32 %v1464, %v1602
        %v1605 = vtanh.pop %v1603
        %v1606 = vtanh.pop %v1604
        %v1609 = vrot.slane %v1605, 1
        %v1610 = vrot.slane %v1606, 1
        %v1613 = vsub.f32 %v1451, %v1609
        %v1614 = vsub.f32 %v1452, %v1610
        %v1617 = vrot.slane %v1613, 7
        %v1618 = vrot.slane %v1614, 7
        %v1621 = vmul.f32 %v1592, %v1617
        %v1622 = vmul.f32 %v1594, %v1618
        %v1623 = vadd.f32 %v1605, %v1621
        %v1624 = vadd.f32 %v1606, %v1622
        %1625 = vst [vmem:[%s262] sm:$0x40] %v1623
        %1626 = vst [vmem:[%s262 + $0x8] sm:$0x40] %v1624
        %v1627 = vld [vmem:[%s230] sm:$0x88]
        %v1628 = vld [vmem:[%s230 + $0x8] sm:$0x8]
        %v1629 = vld [vmem:[%s230 + $0xc] sm:$0x88]
        %v1630 = vld [vmem:[%s230 + $0x14] sm:$0x8]
        %v1631 = vunpack.c.l.bf16 %v1627
        %v1632 = vunpack.c.h.bf16 %v1627
        %v1633 = vunpack.c.l.bf16 %v1628
        %v1634 = vunpack.c.l.bf16 %v1629
        %v1635 = vunpack.c.h.bf16 %v1629
        %v1636 = vunpack.c.l.bf16 %v1630
        %v1637 = vpack.c.bf16 %v1623, %v1623
        %v1638 = vpack.c.bf16 %v1624, %v1624
        %v1641 = vunpack.c.l.b16 %v1637
        %v1642 = vunpack.c.l.b16 %v1638
        %v1643 = vrot.slane %v1641, 6
        %v1644 = vrot.slane %v1642, 5
        %v1645 = vsel %vm586, %v1644, %v1643
        %v1646 = vpack.c.b16 %v1645, %v1645
        %1648 = vmatprep.subr.bf16.mxu0 %v408
        %1649 = vmatpush1.bf16.msra.mxu0 %v407
        %1650 = vmatprep.subr.bf16.mxu0 %v411
        %1651 = vmatpush1.bf16.msra.mxu0 %v410
        %1652 = vmatprep.subr.bf16.mxu0 %v414
        %1653 = vmatpush1.bf16.msra.mxu0 %v413
        %1654 = vmatprep.subr.bf16.mxu0 %v417
        %1655 = vmatpush1.bf16.msra.mxu0 %v416
        %1656 = vmatprep.subr.bf16.mxu0 %v420
        %1657 = vmatpush1.bf16.msra.mxu0 %v419
        %1658 = vmatprep.subr.bf16.mxu0 %v423
        %1659 = vmatpush1.bf16.msra.mxu0 %v422
        %1660 = vmatprep.subr.bf16.mxu0 %v426
        %1661 = vmatpush1.bf16.msra.mxu0 %v425
        %1662 = vmatprep.subr.bf16.mxu0 %v429
        %1663 = vmatpush1.bf16.msra.mxu0 %v428
        %1664 = vmatprep.subr.bf16.mxu0 0
        %1665 = vmatpush1.bf16.msra.mxu0 0
        %1666 = vmatprep.subr.bf16.mxu0 0
        %1667 = vmatpush1.bf16.msra.mxu0 0
        %1668 = vmatprep.subr.bf16.mxu0 0
        %1669 = vmatpush1.bf16.msra.mxu0 0
        %1670 = vmatprep.subr.bf16.mxu0 0
        %1671 = vmatpush1.bf16.msra.mxu0 0
        %1672 = vmatprep.subr.bf16.mxu0 0
        %1673 = vmatpush1.bf16.msra.mxu0 0
        %1674 = vmatprep.subr.bf16.mxu0 0
        %1675 = vmatpush1.bf16.msra.mxu0 0
        %1676 = vmatprep.subr.bf16.mxu0 0
        %1677 = vmatpush1.bf16.msra.mxu0 0
        %1678 = vmatprep.subr.bf16.mxu0 0
        %1679 = vmatpush1.bf16.msra.mxu0 0
        %1680 = vmatprep.mubr.bf16.mxu0 0
        %1681 = vmatmul.mubr.bf16.gmra.mrb[0].mxu0 %v1646
        %v1682 = vpop.f32.mrb[0].mxu0
        %v1683 = vadd.f32 0.0, %v1682
        %v1684 = vpop.f32.mrb[0].mxu0
        %v1685 = vadd.f32 0.0, %v1684
        %v1686 = vpop.f32.mrb[0].mxu0
        %v1687 = vpop.f32.mrb[0].mxu0
        %1688 = vdwg.mxu0
        %1689 = vmatprep.subr.bf16.mxu0 0
        %1690 = vmatpush1.bf16.msra.mxu0 %v409
        %1691 = vmatprep.subr.bf16.mxu0 0
        %1692 = vmatpush1.bf16.msra.mxu0 %v412
        %1693 = vmatprep.subr.bf16.mxu0 0
        %1694 = vmatpush1.bf16.msra.mxu0 %v415
        %1695 = vmatprep.subr.bf16.mxu0 0
        %1696 = vmatpush1.bf16.msra.mxu0 %v418
        %1697 = vmatprep.subr.bf16.mxu0 0
        %1698 = vmatpush1.bf16.msra.mxu0 %v421
        %1699 = vmatprep.subr.bf16.mxu0 0
        %1700 = vmatpush1.bf16.msra.mxu0 %v424
        %1701 = vmatprep.subr.bf16.mxu0 0
        %1702 = vmatpush1.bf16.msra.mxu0 %v427
        %1703 = vmatprep.subr.bf16.mxu0 0
        %1704 = vmatpush1.bf16.msra.mxu0 %v430
        %1705 = vmatprep.subr.bf16.mxu0 0
        %1706 = vmatpush1.bf16.msra.mxu0 0
        %1707 = vmatprep.subr.bf16.mxu0 0
        %1708 = vmatpush1.bf16.msra.mxu0 0
        %1709 = vmatprep.subr.bf16.mxu0 0
        %1710 = vmatpush1.bf16.msra.mxu0 0
        %1711 = vmatprep.subr.bf16.mxu0 0
        %1712 = vmatpush1.bf16.msra.mxu0 0
        %1713 = vmatprep.subr.bf16.mxu0 0
        %1714 = vmatpush1.bf16.msra.mxu0 0
        %1715 = vmatprep.subr.bf16.mxu0 0
        %1716 = vmatpush1.bf16.msra.mxu0 0
        %1717 = vmatprep.subr.bf16.mxu0 0
        %1718 = vmatpush1.bf16.msra.mxu0 0
        %1719 = vmatprep.subr.bf16.mxu0 0
        %1720 = vmatpush1.bf16.msra.mxu0 0
        %1721 = vmatprep.mubr.bf16.mxu0 0
        %1722 = vmatmul.mubr.bf16.gmra.mrb[0].mxu0 %v1646
        %v1723 = vpop.f32.mrb[0].mxu0
        %v1724 = vadd.f32 0.0, %v1723
        %v1725 = vpop.f32.mrb[0].mxu0
        %v1726 = vpop.f32.mrb[0].mxu0
        %v1727 = vpop.f32.mrb[0].mxu0
        %1728 = vdwg.mxu0
        %v1730 = vrot.slane %v1683, 1
        %v1731 = vrot.slane %v1683, 2
        %v1734 = vadd.f32 %v1631, %v1730
        %v1735 = vadd.f32 %v1634, %v1731
        %v1736 = vxor.u32 %v1734, 2147483648
        %v1737 = vxor.u32 %v1735, 2147483648
        %v1738 = vmul.f32 %v1736, 1.442695
        %v1739 = vpow.pop %v1738
        %v1740 = vmul.f32 %v1737, 1.442695
        %v1741 = vpow.pop %v1740
        %v1742 = vadd.f32 %v1739, 1.0
        %v1743 = vadd.f32 %v1741, 1.0
        %v1744 = vrcp.pop %v1742
        %v1745 = vmul.f32 1.0, %v1744
        %v1746 = vrcp.pop %v1743
        %v1747 = vmul.f32 1.0, %v1746
        %v1749 = vrot.slane %v1685, 1
        %v1750 = vrot.slane %v1685, 2
        %v1753 = vadd.f32 %v1632, %v1749
        %v1754 = vadd.f32 %v1635, %v1750
        %v1755 = vxor.u32 %v1753, 2147483648
        %v1756 = vxor.u32 %v1754, 2147483648
        %v1757 = vmul.f32 %v1755, 1.442695
        %v1758 = vpow.pop %v1757
        %v1759 = vmul.f32 %v1756, 1.442695
        %v1760 = vpow.pop %v1759
        %v1761 = vadd.f32 %v1758, 1.0
        %v1762 = vadd.f32 %v1760, 1.0
        %v1763 = vrcp.pop %v1761
        %v1764 = vmul.f32 1.0, %v1763
        %v1765 = vrcp.pop %v1762
        %v1766 = vmul.f32 1.0, %v1765
        %v1767 = vadd.f32 %v1724, %v314
        %v1769 = vrot.slane %v1767, 1
        %v1770 = vrot.slane %v1767, 2
        %v1773 = vmul.f32 %v1745, %v1769
        %v1774 = vmul.f32 %v1747, %v1770
        %v1775 = vadd.f32 %v1633, %v1773
        %v1776 = vadd.f32 %v1636, %v1774
        %v1777 = vtanh.pop %v1775
        %v1778 = vtanh.pop %v1776
        %v1781 = vrot.slane %v1777, 1
        %v1782 = vrot.slane %v1778, 1
        %v1785 = vsub.f32 %v1623, %v1781
        %v1786 = vsub.f32 %v1624, %v1782
        %v1789 = vrot.slane %v1785, 7
        %v1790 = vrot.slane %v1786, 7
        %v1793 = vmul.f32 %v1764, %v1789
        %v1794 = vmul.f32 %v1766, %v1790
        %v1795 = vadd.f32 %v1777, %v1793
        %v1796 = vadd.f32 %v1778, %v1794
        %1797 = vst [vmem:[%s262] sm:$0x80] %v1795
        %1798 = vst [vmem:[%s262 + $0x8] sm:$0x80] %v1796
        %v1801 = vrot.slane %v1796, 7
        %1804 = vst [vmem:[#allocation2 - $0x7] sm:$0x80] %v1795
        %1805 = vst [vmem:[#allocation2 + $0x1] sm:$0x1] %v1801
        %s1806 = sand.u32 %s140, 1
        %s1807 = scalar_lea.sflag [#allocation5], %s1806
        %s1808 = sand.u32 %s140, 1
        %s1809 = smul.addr %s1808, 16
        %s1810 = scalar_lea.vmem [#allocation8], %s1809
        // Predicated region
        $region49: #{tpu_custom_call.1} parent=35 // pred_check
          %p1811 = pneg %p150
        $region50: #{tpu_custom_call.1} parent=35 // pred_check_branch
          %1813 = sbr.rel (%p1811) target = $region52
        $region51: #{tpu_custom_call.1} parent=35 // pred_region
          %s1814 = smul.u32 2, %s26
          %s1816 = ssub.s32 256, 256
          %1817 = vsyncadd %s1807, %s1816
          %s1818 = smul.addr %s1814, 3
          %s1819 = sadd.s32 %s27, %s1818
          %s1820 = smul.addr %s1819, 128
          %s1821 = scalar_lea.hbm %s4, %s1820
          %s1822 = sshll.u32 %s1810, 4
          %s1823 = int_to_ptr.vmem [resolvable:$true] %s1822
          %1828 = dma.vmem_to_hbm [thread:$0]  %s1823, 256, %s1821, %s1807, 128, 384, 8
        $region52: #{tpu_custom_call.1} parent=35 // pred_fallthru
          _
      $region36: #{tpu_custom_call.1} parent=5 // pred_fallthru
        _
      %p1829 = scmp.le.s32.totalorder 2, %s17
      // Predicated region
      $region53: #{tpu_custom_call.1} parent=5 // pred_check
        %p1830 = pneg %p1829
      $region54: #{tpu_custom_call.1} parent=5 // pred_check_branch
        %1832 = sbr.rel (%p1830) target = $region56
      $region55: #{tpu_custom_call.1} parent=5 // pred_region
        %s1833 = ssub.s32 %s17, 2
        // Predicated region
        $region57: #{tpu_custom_call.1} parent=55 // pred_check
          %p1834 = pneg %p156
        $region58: #{tpu_custom_call.1} parent=55 // pred_check_branch
          %1836 = sbr.rel (%p1834) target = $region60
        $region59: #{tpu_custom_call.1} parent=55 // pred_region
          %s1837 = sand.u32 %s141, 1
          %s1838 = scalar_lea.sflag [#allocation5], %s1837
          %s1839 = sand.u32 %s141, 1
          %s1840 = smul.addr %s1839, 16
          %s1841 = scalar_lea.vmem [#allocation8], %s1840
          %1842 = dma.done %s1838, 256
        $region60: #{tpu_custom_call.1} parent=55 // pred_fallthru
          _
      $region56: #{tpu_custom_call.1} parent=5 // pred_fallthru
        _
    $region6: #{tpu_custom_call.1} parent=1 // loop_footer
      %s21 = sadd.s32 1, %s17
    $region7: #{tpu_custom_call.1} parent=1 // loop_footer_branch
      %16 = sbr.rel target = $region3
    $region8: #{tpu_custom_call.1} parent=1 // loop_exit
      _
    %1843 = vsyncpa [#allocation4], 1
    %s1844 = scalar_lea.sflag [#allocation4], 1
    %1845 = vsyncpa %s1844, 1
    %1846 = vsyncpa [#allocation7], 1
    %1847 = vsyncpa [#allocation5], 1
    %s1848 = scalar_lea.sflag [#allocation5], 1
    %1849 = vsyncpa %s1848, 1

</llo_original>
